<compile_context>
chip_gen: v7x
topology: tpu7x:2x2x1
jax: 0.10.0
libtpu: 0.0.40
codegen_flags: <defaults>
</compile_context>

<pallas_src>
import jax
import jax.numpy as jnp
from jax import lax
from jax.experimental import pallas as pl
from jax.experimental.pallas import tpu as pltpu


def _round_up(x, m):
    return (x + m - 1) // m * m


def _make_lstm_recurrence_kernel(tt, hp, t_valid, tp, unroll):
    """Recurrence kernel for TT-step time chunks.

    Refs:
      gx_ref : (TT, TB, 4*Hp)  precomputed x-projection (+bias), time-major
      whh_ref: (Hp, 4*Hp)      recurrent weights W_hh^T (padded, gate-blocked),
                               resident in VMEM for the whole call
      out_ref: (TB, Hp)        final hidden state h_T (written on last chunk)
      h_ref, c_ref: (TB, Hp)   f32 recurrent state, persists across time chunks

    NOTE (fragile by design): correctness relies on grid order (batch outer,
    time inner) with the time axis marked "arbitrary" (sequential) and on the
    per-core scratch semantics — h/c are re-initialized at tc == 0 for every
    batch tile.  Do not reorder the grid axes or change the time-axis
    dimension_semantics.
    """
    needs_time_mask = (tp != t_valid)

    def _sigmoid(x):
        # sigmoid(x) == 0.5 * tanh(0.5 * x) + 0.5 : one EUP push per gate
        # instead of a possible exp + reciprocal lowering.
        return 0.5 * jnp.tanh(0.5 * x) + 0.5

    def kernel(gx_ref, whh_ref, out_ref, h_ref, c_ref):
        tc = pl.program_id(1)                 # time-chunk index (sequential)
        last = pl.num_programs(1) - 1

        @pl.when(tc == 0)
        def _init():
            h_ref[...] = jnp.zeros_like(h_ref)
            c_ref[...] = jnp.zeros_like(c_ref)

        w_hh = whh_ref[...]                   # (Hp, 4Hp), resident in VMEM

        def make_step(masked):
            def step(t_local, carry):
                h, c = carry                                  # f32 (TB, Hp)
                gx_t = gx_ref[t_local].astype(jnp.float32)    # (TB, 4Hp)
                gates = gx_t + jnp.dot(h.astype(w_hh.dtype), w_hh,
                                       preferred_element_type=jnp.float32)
                # PyTorch gate order [i, f, g, o]; slices lane-aligned (Hp%128==0).
                i_g = _sigmoid(gates[:, 0 * hp:1 * hp])
                f_g = _sigmoid(gates[:, 1 * hp:2 * hp])
                g_g = jnp.tanh(gates[:, 2 * hp:3 * hp])
                o_g = _sigmoid(gates[:, 3 * hp:4 * hp])
                c_new = f_g * c + i_g * g_g
                h_new = o_g * jnp.tanh(c_new)
                if masked:
                    # Only the last chunk can contain padded (zero) timesteps.
                    valid = (tc * tt + t_local) < t_valid
                    h_new = jnp.where(valid, h_new, h)
                    c_new = jnp.where(valid, c_new, c)
                return (h_new, c_new)
            return step

        def run_chunk(masked):
            h, c = lax.fori_loop(0, tt, make_step(masked),
                                 (h_ref[...], c_ref[...]), unroll=unroll)
            h_ref[...] = h
            c_ref[...] = c

        if needs_time_mask:
            # Hot chunks run unmasked; only the final chunk pays for the
            # validity selects.
            @pl.when(tc != last)
            def _hot():
                run_chunk(False)

            @pl.when(tc == last)
            def _tail():
                run_chunk(True)
        else:
            run_chunk(False)

        @pl.when(tc == last)
        def _finalize():
            out_ref[...] = h_ref[...].astype(out_ref.dtype)

    return kernel


def lstm_classifier_forward(x, w_ih, w_hh, b_ih, b_hh, w_fc, b_fc,
                            *, matmul_dtype=jnp.bfloat16, time_chunk=64,
                            vmem_budget_bytes=48 * 1024 * 1024):
    """x: (B, T, I) f32.  Weights in PyTorch layout:
       w_ih (4H, I), w_hh (4H, H), b_ih/b_hh (4H,), w_fc (C, H), b_fc (C,).

    matmul_dtype: dtype of the streamed gates_x / W_hh and of the MXU operands
    (default bf16 — the v6e/v7x fast path; halves HBM/VMEM traffic).  State and
    accumulation stay f32.  Use jnp.float32 for bit-tight results or very long
    sequences.
    """
    x = jnp.asarray(x, jnp.float32)
    B, T, I = x.shape
    H = w_hh.shape[1]

    bf16 = jnp.dtype(matmul_dtype) == jnp.dtype(jnp.bfloat16)

    # ---- Tiling --------------------------------------------------------------
    Hp = _round_up(H, 128)            # per-gate lane padding
    Bp8 = _round_up(B, 8)
    # Ensure >= 2 batch tiles whenever Bp >= 16 so both v7x TensorCores get work
    # (the time axis is inherently serial; batch is the only parallel axis).
    if Bp8 >= 16:
        TB = min(128, max(8, _round_up(Bp8 // 2, 8)))
    else:
        TB = Bp8
    Bp = _round_up(Bp8, TB)

    # VMEM-budget-driven time-chunk size TT (multiple of 8).
    itemsize = jnp.dtype(matmul_dtype).itemsize

    def _vmem_needed(tt):
        gx = 2 * tt * TB * 4 * Hp * itemsize      # gates_x block, double-buffered
        whh = Hp * 4 * Hp * itemsize              # W_hh^T, single resident copy
        state = 2 * TB * Hp * 4                   # h / c scratch (f32)
        out = 2 * TB * Hp * 4                     # output block
        return gx + whh + state + out

    tt_cap = _round_up(min(max(T, 1), max(time_chunk, 8)), 8)
    TT = 8
    for cand in range(tt_cap, 7, -8):
        if _vmem_needed(cand) <= vmem_budget_bytes:
            TT = cand
            break
    Tp = _round_up(T, TT)
    n_b = Bp // TB
    n_t = Tp // TT
    # Scoped VMEM: enough for the chosen tiles + headroom, capped below v7x's
    # 64 MiB physical VMEM.
    vmem_limit = int(min(56 * 2**20, max(32 * 2**20, _vmem_needed(TT) + (8 << 20))))

    # ---- Phase 1 (XLA): hoisted input projection, time-major & gate-blocked --
    def cast(a):
        return a.astype(jnp.bfloat16) if bf16 else a.astype(jnp.float32)

    w_ih4 = jnp.asarray(w_ih, jnp.float32).reshape(4, H, I)
    bias4 = (jnp.asarray(b_ih, jnp.float32)
             + jnp.asarray(b_hh, jnp.float32)).reshape(4, H)
    # Directly (T, B, 4, H): no separate full-tensor transpose pass.
    gates_x = jnp.einsum("bti,ghi->tbgh", cast(x), cast(w_ih4),
                         preferred_element_type=jnp.float32) + bias4
    gates_x = jnp.pad(gates_x, ((0, Tp - T), (0, Bp - B), (0, 0), (0, Hp - H)))
    gates_x = gates_x.reshape(Tp, Bp, 4 * Hp).astype(matmul_dtype)

    # W_hh^T, per-gate padded: (Hp, 4*Hp).  Padded rows/cols are zero, so the
    # padded lanes of h/c stay exactly 0 and never leak into real gates.
    whh_p = jnp.asarray(w_hh, jnp.float32).T.reshape(H, 4, H)
    whh_p = jnp.pad(whh_p, ((0, Hp - H), (0, 0), (0, Hp - H)))
    whh_p = whh_p.reshape(Hp, 4 * Hp).astype(matmul_dtype)

    kernel = _make_lstm_recurrence_kernel(TT, Hp, T, Tp, unroll=min(TT, 8))

    # ---- Phase 2 (Pallas): the recurrence ------------------------------------
    h_T = pl.pallas_call(
        kernel,
        out_shape=jax.ShapeDtypeStruct((Bp, Hp), jnp.float32),
        grid_spec=pltpu.PrefetchScalarGridSpec(
            num_scalar_prefetch=0,
            grid=(n_b, n_t),                       # (batch tiles, time chunks)
            in_specs=[
                # gates_x: streamed, auto double-buffered per time chunk.
                pl.BlockSpec((TT, TB, 4 * Hp), lambda b, t: (t, b, 0)),
                # W_hh^T: whole array resident in VMEM, single copy (its block
                # index would be constant, so pipelined double-buffering would
                # only waste VMEM).
                pl.BlockSpec(memory_space=pltpu.MemorySpace.VMEM),
            ],
            out_specs=pl.BlockSpec((TB, Hp), lambda b, t: (b, 0)),   # h_T
            scratch_shapes=[
                pltpu.VMEM((TB, Hp), jnp.float32),   # h state (f32)
                pltpu.VMEM((TB, Hp), jnp.float32),   # c state (f32)
            ],
        ),
        compiler_params=pltpu.CompilerParams(
            dimension_semantics=("parallel", "arbitrary"),
            vmem_limit_bytes=vmem_limit,
        ),
    )(gates_x, whh_p)

    # ---- Phase 3 (XLA): classifier on the last hidden state ------------------
    h_last = h_T[:B, :H]
    return h_last @ jnp.asarray(w_fc, jnp.float32).T + jnp.asarray(b_fc, jnp.float32)


def _reference_forward(x, w_ih, w_hh, b_ih, b_hh, w_fc, b_fc):
    """Pure-JAX reference matching torch.nn.LSTM + Linear semantics."""
    B, T, I = x.shape
    H = w_hh.shape[1]

    def step(carry, x_t):
        h, c = carry
        gates = x_t @ w_ih.T + h @ w_hh.T + b_ih + b_hh
        i = jax.nn.sigmoid(gates[:, 0 * H:1 * H])
        f = jax.nn.sigmoid(gates[:, 1 * H:2 * H])
        g = jnp.tanh(gates[:, 2 * H:3 * H])
        o = jax.nn.sigmoid(gates[:, 3 * H:4 * H])
        c = f * c + i * g
        h = o * jnp.tanh(c)
        return (h, c), None

    h0 = jnp.zeros((B, H), jnp.float32)
    c0 = jnp.zeros((B, H), jnp.float32)
    (h_T, _), _ = jax.lax.scan(step, (h0, c0), jnp.swapaxes(x, 0, 1))
    return h_T @ w_fc.T + b_fc


if __name__ == "__main__":
    # Small deterministic shapes: batch=2, seq=8, input_size=16, hidden=32, classes=4
    B, T, I, H, C = 2, 8, 16, 32, 4

    key = jax.random.PRNGKey(0)
    kx, k1, k2, k3, k4, k5, k6 = jax.random.split(key, 7)

    x = jax.random.normal(kx, (B, T, I), dtype=jnp.float32)

    # PyTorch-style uniform(-1/sqrt(H), 1/sqrt(H)) init for LSTM and Linear params.
    s = 1.0 / jnp.sqrt(jnp.float32(H))
    w_ih = jax.random.uniform(k1, (4 * H, I), jnp.float32, -s, s)
    w_hh = jax.random.uniform(k2, (4 * H, H), jnp.float32, -s, s)
    b_ih = jax.random.uniform(k3, (4 * H,), jnp.float32, -s, s)
    b_hh = jax.random.uniform(k4, (4 * H,), jnp.float32, -s, s)
    w_fc = jax.random.uniform(k5, (C, H), jnp.float32, -s, s)
    b_fc = jax.random.uniform(k6, (C,), jnp.float32, -s, s)

    ref = _reference_forward(x, w_ih, w_hh, b_ih, b_hh, w_fc, b_fc)

    # f32 MXU operands: matches the PyTorch-style reference tightly.
    out = lstm_classifier_forward(x, w_ih, w_hh, b_ih, b_hh, w_fc, b_fc,
                                  matmul_dtype=jnp.float32)
    out = jax.block_until_ready(out)
    assert out.shape == (B, C)
    assert jnp.allclose(out, ref, atol=1e-4, rtol=1e-4), (out, ref)

    # bf16 streamed operands, f32 state/accumulation (v6e/v7x fast path).
    out_bf16 = lstm_classifier_forward(x, w_ih, w_hh, b_ih, b_hh, w_fc, b_fc,
                                       matmul_dtype=jnp.bfloat16)
    out_bf16 = jax.block_until_ready(out_bf16)
    assert out_bf16.shape == (B, C)
    assert jnp.allclose(out_bf16, ref, atol=1e-1, rtol=1e-1), (out_bf16, ref)

    print("KERNEL_OK")
</pallas_src>

<mosaic_0001>
module attributes {stable_mosaic.version = 11 : i64} {
  func.func @kernel(%arg0: i32, %arg1: i32, %arg2: memref<8x8x512xf32, #tpu.memory_space<vmem>>, %arg3: memref<128x512xf32, #tpu.memory_space<vmem>>, %arg4: memref<8x128xf32, #tpu.memory_space<vmem>>, %arg5: memref<8x128xf32, #tpu.memory_space<vmem>>, %arg6: memref<8x128xf32, #tpu.memory_space<vmem>>) attributes {dimension_semantics = [#tpu.dimension_semantics<parallel>, #tpu.dimension_semantics<arbitrary>], iteration_bounds = array<i64: 1, 1>, scalar_prefetch = 0 : i64, scratch_operands = 2 : i64, tpu.core_type = #tpu.core_type<tc>, window_params = [{transform_indices = @transform_0, window_bounds = array<i64: 8, 8, 512>}, {pipeline_mode = #tpu.pipeline_mode<synchronous>, transform_indices = @transform_1, window_bounds = array<i64: 128, 512>}, {transform_indices = @transform_2, window_bounds = array<i64: 8, 128>}]} {
    %c0_i32 = arith.constant 0 : i32
    %0 = arith.cmpi eq, %arg1, %c0_i32 : i32
    %1 = arith.extui %0 : i1 to i32
    %c0_i32_0 = arith.constant 0 : i32
    %2 = arith.cmpi ne, %1, %c0_i32_0 : i32
    scf.if %2 {
      %cst_108 = arith.constant 0.000000e+00 : f32
      %299 = vector.broadcast %cst_108 : f32 to vector<8x128xf32>
      %c0_109 = arith.constant 0 : index
      %c0_110 = arith.constant 0 : index
      %300 = vector.load %arg5[%c0_109, %c0_110] : memref<8x128xf32, #tpu.memory_space<vmem>>, vector<8x128xf32>
      tpu.vector_store %arg5[%c0_109, %c0_110], %299 {strides = array<i32>} : memref<8x128xf32, #tpu.memory_space<vmem>>, vector<8x128xf32>,
      %cst_111 = arith.constant 0.000000e+00 : f32
      %301 = vector.broadcast %cst_111 : f32 to vector<8x128xf32>
      %c0_112 = arith.constant 0 : index
      %c0_113 = arith.constant 0 : index
      %302 = vector.load %arg6[%c0_112, %c0_113] : memref<8x128xf32, #tpu.memory_space<vmem>>, vector<8x128xf32>
      tpu.vector_store %arg6[%c0_112, %c0_113], %301 {strides = array<i32>} : memref<8x128xf32, #tpu.memory_space<vmem>>, vector<8x128xf32>,
    } else {
    }
    %c0 = arith.constant 0 : index
    %c0_1 = arith.constant 0 : index
    %3 = vector.load %arg3[%c0, %c0_1] : memref<128x512xf32, #tpu.memory_space<vmem>>, vector<128x512xf32>
    %c0_2 = arith.constant 0 : index
    %c0_3 = arith.constant 0 : index
    %4 = vector.load %arg5[%c0_2, %c0_3] : memref<8x128xf32, #tpu.memory_space<vmem>>, vector<8x128xf32>
    %c0_4 = arith.constant 0 : index
    %c0_5 = arith.constant 0 : index
    %5 = vector.load %arg6[%c0_4, %c0_5] : memref<8x128xf32, #tpu.memory_space<vmem>>, vector<8x128xf32>
    %c0_i32_6 = arith.constant 0 : i32
    %6 = arith.index_cast %c0_i32_6 : i32 to index
    %c0_7 = arith.constant 0 : index
    %c0_8 = arith.constant 0 : index
    %7 = vector.load %arg2[%6, %c0_7, %c0_8] : memref<8x8x512xf32, #tpu.memory_space<vmem>>, vector<1x8x512xf32>
    %8 = vector.shape_cast %7 : vector<1x8x512xf32> to vector<8x512xf32>
    %cst = arith.constant dense<0.000000e+00> : vector<8x512xf32>
    %9 = tpu.matmul %4, %3, %cst {dimension_numbers = #tpu.dot_dimension_numbers<[1], [0], [0], [1], [0, 0, 1, 1], [], []>} : vector<8x128xf32>, vector<128x512xf32>, vector<8x512xf32> -> vector<8x512xf32>
    %10 = arith.addf %8, %9 : vector<8x512xf32>
    %11 = vector.extract_strided_slice %10 {offsets = [0, 0], sizes = [8, 128], strides = [1, 1]} : vector<8x512xf32> to vector<8x128xf32>
    %cst_9 = arith.constant 5.000000e-01 : f32
    %12 = vector.broadcast %cst_9 : f32 to vector<8x128xf32>
    %13 = arith.mulf %12, %11 : vector<8x128xf32>
    %14 = math.tanh %13 : vector<8x128xf32>
    %cst_10 = arith.constant 5.000000e-01 : f32
    %15 = vector.broadcast %cst_10 : f32 to vector<8x128xf32>
    %16 = arith.mulf %15, %14 : vector<8x128xf32>
    %cst_11 = arith.constant 5.000000e-01 : f32
    %17 = vector.broadcast %cst_11 : f32 to vector<8x128xf32>
    %18 = arith.addf %16, %17 : vector<8x128xf32>
    %19 = vector.extract_strided_slice %10 {offsets = [0, 128], sizes = [8, 128], strides = [1, 1]} : vector<8x512xf32> to vector<8x128xf32>
    %cst_12 = arith.constant 5.000000e-01 : f32
    %20 = vector.broadcast %cst_12 : f32 to vector<8x128xf32>
    %21 = arith.mulf %20, %19 : vector<8x128xf32>
    %22 = math.tanh %21 : vector<8x128xf32>
    %cst_13 = arith.constant 5.000000e-01 : f32
    %23 = vector.broadcast %cst_13 : f32 to vector<8x128xf32>
    %24 = arith.mulf %23, %22 : vector<8x128xf32>
    %cst_14 = arith.constant 5.000000e-01 : f32
    %25 = vector.broadcast %cst_14 : f32 to vector<8x128xf32>
    %26 = arith.addf %24, %25 : vector<8x128xf32>
    %27 = vector.extract_strided_slice %10 {offsets = [0, 256], sizes = [8, 128], strides = [1, 1]} : vector<8x512xf32> to vector<8x128xf32>
    %28 = math.tanh %27 : vector<8x128xf32>
    %29 = vector.extract_strided_slice %10 {offsets = [0, 384], sizes = [8, 128], strides = [1, 1]} : vector<8x512xf32> to vector<8x128xf32>
    %cst_15 = arith.constant 5.000000e-01 : f32
    %30 = vector.broadcast %cst_15 : f32 to vector<8x128xf32>
    %31 = arith.mulf %30, %29 : vector<8x128xf32>
    %32 = math.tanh %31 : vector<8x128xf32>
    %cst_16 = arith.constant 5.000000e-01 : f32
    %33 = vector.broadcast %cst_16 : f32 to vector<8x128xf32>
    %34 = arith.mulf %33, %32 : vector<8x128xf32>
    %cst_17 = arith.constant 5.000000e-01 : f32
    %35 = vector.broadcast %cst_17 : f32 to vector<8x128xf32>
    %36 = arith.addf %34, %35 : vector<8x128xf32>
    %37 = arith.mulf %26, %5 : vector<8x128xf32>
    %38 = arith.mulf %18, %28 : vector<8x128xf32>
    %39 = arith.addf %37, %38 : vector<8x128xf32>
    %40 = math.tanh %39 : vector<8x128xf32>
    %41 = arith.mulf %36, %40 : vector<8x128xf32>
    %c1_i32 = arith.constant 1 : i32
    %42 = arith.index_cast %c1_i32 : i32 to index
    %c0_18 = arith.constant 0 : index
    %c0_19 = arith.constant 0 : index
    %43 = vector.load %arg2[%42, %c0_18, %c0_19] : memref<8x8x512xf32, #tpu.memory_space<vmem>>, vector<1x8x512xf32>
    %44 = vector.shape_cast %43 : vector<1x8x512xf32> to vector<8x512xf32>
    %cst_20 = arith.constant dense<0.000000e+00> : vector<8x512xf32>
    %45 = tpu.matmul %41, %3, %cst_20 {dimension_numbers = #tpu.dot_dimension_numbers<[1], [0], [0], [1], [0, 0, 1, 1], [], []>} : vector<8x128xf32>, vector<128x512xf32>, vector<8x512xf32> -> vector<8x512xf32>
    %46 = arith.addf %44, %45 : vector<8x512xf32>
    %47 = vector.extract_strided_slice %46 {offsets = [0, 0], sizes = [8, 128], strides = [1, 1]} : vector<8x512xf32> to vector<8x128xf32>
    %cst_21 = arith.constant 5.000000e-01 : f32
    %48 = vector.broadcast %cst_21 : f32 to vector<8x128xf32>
    %49 = arith.mulf %48, %47 : vector<8x128xf32>
    %50 = math.tanh %49 : vector<8x128xf32>
    %cst_22 = arith.constant 5.000000e-01 : f32
    %51 = vector.broadcast %cst_22 : f32 to vector<8x128xf32>
    %52 = arith.mulf %51, %50 : vector<8x128xf32>
    %cst_23 = arith.constant 5.000000e-01 : f32
    %53 = vector.broadcast %cst_23 : f32 to vector<8x128xf32>
    %54 = arith.addf %52, %53 : vector<8x128xf32>
    %55 = vector.extract_strided_slice %46 {offsets = [0, 128], sizes = [8, 128], strides = [1, 1]} : vector<8x512xf32> to vector<8x128xf32>
    %cst_24 = arith.constant 5.000000e-01 : f32
    %56 = vector.broadcast %cst_24 : f32 to vector<8x128xf32>
    %57 = arith.mulf %56, %55 : vector<8x128xf32>
    %58 = math.tanh %57 : vector<8x128xf32>
    %cst_25 = arith.constant 5.000000e-01 : f32
    %59 = vector.broadcast %cst_25 : f32 to vector<8x128xf32>
    %60 = arith.mulf %59, %58 : vector<8x128xf32>
    %cst_26 = arith.constant 5.000000e-01 : f32
    %61 = vector.broadcast %cst_26 : f32 to vector<8x128xf32>
    %62 = arith.addf %60, %61 : vector<8x128xf32>
    %63 = vector.extract_strided_slice %46 {offsets = [0, 256], sizes = [8, 128], strides = [1, 1]} : vector<8x512xf32> to vector<8x128xf32>
    %64 = math.tanh %63 : vector<8x128xf32>
    %65 = vector.extract_strided_slice %46 {offsets = [0, 384], sizes = [8, 128], strides = [1, 1]} : vector<8x512xf32> to vector<8x128xf32>
    %cst_27 = arith.constant 5.000000e-01 : f32
    %66 = vector.broadcast %cst_27 : f32 to vector<8x128xf32>
    %67 = arith.mulf %66, %65 : vector<8x128xf32>
    %68 = math.tanh %67 : vector<8x128xf32>
    %cst_28 = arith.constant 5.000000e-01 : f32
    %69 = vector.broadcast %cst_28 : f32 to vector<8x128xf32>
    %70 = arith.mulf %69, %68 : vector<8x128xf32>
    %cst_29 = arith.constant 5.000000e-01 : f32
    %71 = vector.broadcast %cst_29 : f32 to vector<8x128xf32>
    %72 = arith.addf %70, %71 : vector<8x128xf32>
    %73 = arith.mulf %62, %39 : vector<8x128xf32>
    %74 = arith.mulf %54, %64 : vector<8x128xf32>
    %75 = arith.addf %73, %74 : vector<8x128xf32>
    %76 = math.tanh %75 : vector<8x128xf32>
    %77 = arith.mulf %72, %76 : vector<8x128xf32>
    %c2_i32 = arith.constant 2 : i32
    %78 = arith.index_cast %c2_i32 : i32 to index
    %c0_30 = arith.constant 0 : index
    %c0_31 = arith.constant 0 : index
    %79 = vector.load %arg2[%78, %c0_30, %c0_31] : memref<8x8x512xf32, #tpu.memory_space<vmem>>, vector<1x8x512xf32>
    %80 = vector.shape_cast %79 : vector<1x8x512xf32> to vector<8x512xf32>
    %cst_32 = arith.constant dense<0.000000e+00> : vector<8x512xf32>
    %81 = tpu.matmul %77, %3, %cst_32 {dimension_numbers = #tpu.dot_dimension_numbers<[1], [0], [0], [1], [0, 0, 1, 1], [], []>} : vector<8x128xf32>, vector<128x512xf32>, vector<8x512xf32> -> vector<8x512xf32>
    %82 = arith.addf %80, %81 : vector<8x512xf32>
    %83 = vector.extract_strided_slice %82 {offsets = [0, 0], sizes = [8, 128], strides = [1, 1]} : vector<8x512xf32> to vector<8x128xf32>
    %cst_33 = arith.constant 5.000000e-01 : f32
    %84 = vector.broadcast %cst_33 : f32 to vector<8x128xf32>
    %85 = arith.mulf %84, %83 : vector<8x128xf32>
    %86 = math.tanh %85 : vector<8x128xf32>
    %cst_34 = arith.constant 5.000000e-01 : f32
    %87 = vector.broadcast %cst_34 : f32 to vector<8x128xf32>
    %88 = arith.mulf %87, %86 : vector<8x128xf32>
    %cst_35 = arith.constant 5.000000e-01 : f32
    %89 = vector.broadcast %cst_35 : f32 to vector<8x128xf32>
    %90 = arith.addf %88, %89 : vector<8x128xf32>
    %91 = vector.extract_strided_slice %82 {offsets = [0, 128], sizes = [8, 128], strides = [1, 1]} : vector<8x512xf32> to vector<8x128xf32>
    %cst_36 = arith.constant 5.000000e-01 : f32
    %92 = vector.broadcast %cst_36 : f32 to vector<8x128xf32>
    %93 = arith.mulf %92, %91 : vector<8x128xf32>
    %94 = math.tanh %93 : vector<8x128xf32>
    %cst_37 = arith.constant 5.000000e-01 : f32
    %95 = vector.broadcast %cst_37 : f32 to vector<8x128xf32>
    %96 = arith.mulf %95, %94 : vector<8x128xf32>
    %cst_38 = arith.constant 5.000000e-01 : f32
    %97 = vector.broadcast %cst_38 : f32 to vector<8x128xf32>
    %98 = arith.addf %96, %97 : vector<8x128xf32>
    %99 = vector.extract_strided_slice %82 {offsets = [0, 256], sizes = [8, 128], strides = [1, 1]} : vector<8x512xf32> to vector<8x128xf32>
    %100 = math.tanh %99 : vector<8x128xf32>
    %101 = vector.extract_strided_slice %82 {offsets = [0, 384], sizes = [8, 128], strides = [1, 1]} : vector<8x512xf32> to vector<8x128xf32>
    %cst_39 = arith.constant 5.000000e-01 : f32
    %102 = vector.broadcast %cst_39 : f32 to vector<8x128xf32>
    %103 = arith.mulf %102, %101 : vector<8x128xf32>
    %104 = math.tanh %103 : vector<8x128xf32>
    %cst_40 = arith.constant 5.000000e-01 : f32
    %105 = vector.broadcast %cst_40 : f32 to vector<8x128xf32>
    %106 = arith.mulf %105, %104 : vector<8x128xf32>
    %cst_41 = arith.constant 5.000000e-01 : f32
    %107 = vector.broadcast %cst_41 : f32 to vector<8x128xf32>
    %108 = arith.addf %106, %107 : vector<8x128xf32>
    %109 = arith.mulf %98, %75 : vector<8x128xf32>
    %110 = arith.mulf %90, %100 : vector<8x128xf32>
    %111 = arith.addf %109, %110 : vector<8x128xf32>
    %112 = math.tanh %111 : vector<8x128xf32>
    %113 = arith.mulf %108, %112 : vector<8x128xf32>
    %c3_i32 = arith.constant 3 : i32
    %114 = arith.index_cast %c3_i32 : i32 to index
    %c0_42 = arith.constant 0 : index
    %c0_43 = arith.constant 0 : index
    %115 = vector.load %arg2[%114, %c0_42, %c0_43] : memref<8x8x512xf32, #tpu.memory_space<vmem>>, vector<1x8x512xf32>
    %116 = vector.shape_cast %115 : vector<1x8x512xf32> to vector<8x512xf32>
    %cst_44 = arith.constant dense<0.000000e+00> : vector<8x512xf32>
    %117 = tpu.matmul %113, %3, %cst_44 {dimension_numbers = #tpu.dot_dimension_numbers<[1], [0], [0], [1], [0, 0, 1, 1], [], []>} : vector<8x128xf32>, vector<128x512xf32>, vector<8x512xf32> -> vector<8x512xf32>
    %118 = arith.addf %116, %117 : vector<8x512xf32>
    %119 = vector.extract_strided_slice %118 {offsets = [0, 0], sizes = [8, 128], strides = [1, 1]} : vector<8x512xf32> to vector<8x128xf32>
    %cst_45 = arith.constant 5.000000e-01 : f32
    %120 = vector.broadcast %cst_45 : f32 to vector<8x128xf32>
    %121 = arith.mulf %120, %119 : vector<8x128xf32>
    %122 = math.tanh %121 : vector<8x128xf32>
    %cst_46 = arith.constant 5.000000e-01 : f32
    %123 = vector.broadcast %cst_46 : f32 to vector<8x128xf32>
    %124 = arith.mulf %123, %122 : vector<8x128xf32>
    %cst_47 = arith.constant 5.000000e-01 : f32
    %125 = vector.broadcast %cst_47 : f32 to vector<8x128xf32>
    %126 = arith.addf %124, %125 : vector<8x128xf32>
    %127 = vector.extract_strided_slice %118 {offsets = [0, 128], sizes = [8, 128], strides = [1, 1]} : vector<8x512xf32> to vector<8x128xf32>
    %cst_48 = arith.constant 5.000000e-01 : f32
    %128 = vector.broadcast %cst_48 : f32 to vector<8x128xf32>
    %129 = arith.mulf %128, %127 : vector<8x128xf32>
    %130 = math.tanh %129 : vector<8x128xf32>
    %cst_49 = arith.constant 5.000000e-01 : f32
    %131 = vector.broadcast %cst_49 : f32 to vector<8x128xf32>
    %132 = arith.mulf %131, %130 : vector<8x128xf32>
    %cst_50 = arith.constant 5.000000e-01 : f32
    %133 = vector.broadcast %cst_50 : f32 to vector<8x128xf32>
    %134 = arith.addf %132, %133 : vector<8x128xf32>
    %135 = vector.extract_strided_slice %118 {offsets = [0, 256], sizes = [8, 128], strides = [1, 1]} : vector<8x512xf32> to vector<8x128xf32>
    %136 = math.tanh %135 : vector<8x128xf32>
    %137 = vector.extract_strided_slice %118 {offsets = [0, 384], sizes = [8, 128], strides = [1, 1]} : vector<8x512xf32> to vector<8x128xf32>
    %cst_51 = arith.constant 5.000000e-01 : f32
    %138 = vector.broadcast %cst_51 : f32 to vector<8x128xf32>
    %139 = arith.mulf %138, %137 : vector<8x128xf32>
    %140 = math.tanh %139 : vector<8x128xf32>
    %cst_52 = arith.constant 5.000000e-01 : f32
    %141 = vector.broadcast %cst_52 : f32 to vector<8x128xf32>
    %142 = arith.mulf %141, %140 : vector<8x128xf32>
    %cst_53 = arith.constant 5.000000e-01 : f32
    %143 = vector.broadcast %cst_53 : f32 to vector<8x128xf32>
    %144 = arith.addf %142, %143 : vector<8x128xf32>
    %145 = arith.mulf %134, %111 : vector<8x128xf32>
    %146 = arith.mulf %126, %136 : vector<8x128xf32>
    %147 = arith.addf %145, %146 : vector<8x128xf32>
    %148 = math.tanh %147 : vector<8x128xf32>
    %149 = arith.mulf %144, %148 : vector<8x128xf32>
    %c4_i32 = arith.constant 4 : i32
    %150 = arith.index_cast %c4_i32 : i32 to index
    %c0_54 = arith.constant 0 : index
    %c0_55 = arith.constant 0 : index
    %151 = vector.load %arg2[%150, %c0_54, %c0_55] : memref<8x8x512xf32, #tpu.memory_space<vmem>>, vector<1x8x512xf32>
    %152 = vector.shape_cast %151 : vector<1x8x512xf32> to vector<8x512xf32>
    %cst_56 = arith.constant dense<0.000000e+00> : vector<8x512xf32>
    %153 = tpu.matmul %149, %3, %cst_56 {dimension_numbers = #tpu.dot_dimension_numbers<[1], [0], [0], [1], [0, 0, 1, 1], [], []>} : vector<8x128xf32>, vector<128x512xf32>, vector<8x512xf32> -> vector<8x512xf32>
    %154 = arith.addf %152, %153 : vector<8x512xf32>
    %155 = vector.extract_strided_slice %154 {offsets = [0, 0], sizes = [8, 128], strides = [1, 1]} : vector<8x512xf32> to vector<8x128xf32>
    %cst_57 = arith.constant 5.000000e-01 : f32
    %156 = vector.broadcast %cst_57 : f32 to vector<8x128xf32>
    %157 = arith.mulf %156, %155 : vector<8x128xf32>
    %158 = math.tanh %157 : vector<8x128xf32>
    %cst_58 = arith.constant 5.000000e-01 : f32
    %159 = vector.broadcast %cst_58 : f32 to vector<8x128xf32>
    %160 = arith.mulf %159, %158 : vector<8x128xf32>
    %cst_59 = arith.constant 5.000000e-01 : f32
    %161 = vector.broadcast %cst_59 : f32 to vector<8x128xf32>
    %162 = arith.addf %160, %161 : vector<8x128xf32>
    %163 = vector.extract_strided_slice %154 {offsets = [0, 128], sizes = [8, 128], strides = [1, 1]} : vector<8x512xf32> to vector<8x128xf32>
    %cst_60 = arith.constant 5.000000e-01 : f32
    %164 = vector.broadcast %cst_60 : f32 to vector<8x128xf32>
    %165 = arith.mulf %164, %163 : vector<8x128xf32>
    %166 = math.tanh %165 : vector<8x128xf32>
    %cst_61 = arith.constant 5.000000e-01 : f32
    %167 = vector.broadcast %cst_61 : f32 to vector<8x128xf32>
    %168 = arith.mulf %167, %166 : vector<8x128xf32>
    %cst_62 = arith.constant 5.000000e-01 : f32
    %169 = vector.broadcast %cst_62 : f32 to vector<8x128xf32>
    %170 = arith.addf %168, %169 : vector<8x128xf32>
    %171 = vector.extract_strided_slice %154 {offsets = [0, 256], sizes = [8, 128], strides = [1, 1]} : vector<8x512xf32> to vector<8x128xf32>
    %172 = math.tanh %171 : vector<8x128xf32>
    %173 = vector.extract_strided_slice %154 {offsets = [0, 384], sizes = [8, 128], strides = [1, 1]} : vector<8x512xf32> to vector<8x128xf32>
    %cst_63 = arith.constant 5.000000e-01 : f32
    %174 = vector.broadcast %cst_63 : f32 to vector<8x128xf32>
    %175 = arith.mulf %174, %173 : vector<8x128xf32>
    %176 = math.tanh %175 : vector<8x128xf32>
    %cst_64 = arith.constant 5.000000e-01 : f32
    %177 = vector.broadcast %cst_64 : f32 to vector<8x128xf32>
    %178 = arith.mulf %177, %176 : vector<8x128xf32>
    %cst_65 = arith.constant 5.000000e-01 : f32
    %179 = vector.broadcast %cst_65 : f32 to vector<8x128xf32>
    %180 = arith.addf %178, %179 : vector<8x128xf32>
    %181 = arith.mulf %170, %147 : vector<8x128xf32>
    %182 = arith.mulf %162, %172 : vector<8x128xf32>
    %183 = arith.addf %181, %182 : vector<8x128xf32>
    %184 = math.tanh %183 : vector<8x128xf32>
    %185 = arith.mulf %180, %184 : vector<8x128xf32>
    %c5_i32 = arith.constant 5 : i32
    %186 = arith.index_cast %c5_i32 : i32 to index
    %c0_66 = arith.constant 0 : index
    %c0_67 = arith.constant 0 : index
    %187 = vector.load %arg2[%186, %c0_66, %c0_67] : memref<8x8x512xf32, #tpu.memory_space<vmem>>, vector<1x8x512xf32>
    %188 = vector.shape_cast %187 : vector<1x8x512xf32> to vector<8x512xf32>
    %cst_68 = arith.constant dense<0.000000e+00> : vector<8x512xf32>
    %189 = tpu.matmul %185, %3, %cst_68 {dimension_numbers = #tpu.dot_dimension_numbers<[1], [0], [0], [1], [0, 0, 1, 1], [], []>} : vector<8x128xf32>, vector<128x512xf32>, vector<8x512xf32> -> vector<8x512xf32>
    %190 = arith.addf %188, %189 : vector<8x512xf32>
    %191 = vector.extract_strided_slice %190 {offsets = [0, 0], sizes = [8, 128], strides = [1, 1]} : vector<8x512xf32> to vector<8x128xf32>
    %cst_69 = arith.constant 5.000000e-01 : f32
    %192 = vector.broadcast %cst_69 : f32 to vector<8x128xf32>
    %193 = arith.mulf %192, %191 : vector<8x128xf32>
    %194 = math.tanh %193 : vector<8x128xf32>
    %cst_70 = arith.constant 5.000000e-01 : f32
    %195 = vector.broadcast %cst_70 : f32 to vector<8x128xf32>
    %196 = arith.mulf %195, %194 : vector<8x128xf32>
    %cst_71 = arith.constant 5.000000e-01 : f32
    %197 = vector.broadcast %cst_71 : f32 to vector<8x128xf32>
    %198 = arith.addf %196, %197 : vector<8x128xf32>
    %199 = vector.extract_strided_slice %190 {offsets = [0, 128], sizes = [8, 128], strides = [1, 1]} : vector<8x512xf32> to vector<8x128xf32>
    %cst_72 = arith.constant 5.000000e-01 : f32
    %200 = vector.broadcast %cst_72 : f32 to vector<8x128xf32>
    %201 = arith.mulf %200, %199 : vector<8x128xf32>
    %202 = math.tanh %201 : vector<8x128xf32>
    %cst_73 = arith.constant 5.000000e-01 : f32
    %203 = vector.broadcast %cst_73 : f32 to vector<8x128xf32>
    %204 = arith.mulf %203, %202 : vector<8x128xf32>
    %cst_74 = arith.constant 5.000000e-01 : f32
    %205 = vector.broadcast %cst_74 : f32 to vector<8x128xf32>
    %206 = arith.addf %204, %205 : vector<8x128xf32>
    %207 = vector.extract_strided_slice %190 {offsets = [0, 256], sizes = [8, 128], strides = [1, 1]} : vector<8x512xf32> to vector<8x128xf32>
    %208 = math.tanh %207 : vector<8x128xf32>
    %209 = vector.extract_strided_slice %190 {offsets = [0, 384], sizes = [8, 128], strides = [1, 1]} : vector<8x512xf32> to vector<8x128xf32>
    %cst_75 = arith.constant 5.000000e-01 : f32
    %210 = vector.broadcast %cst_75 : f32 to vector<8x128xf32>
    %211 = arith.mulf %210, %209 : vector<8x128xf32>
    %212 = math.tanh %211 : vector<8x128xf32>
    %cst_76 = arith.constant 5.000000e-01 : f32
    %213 = vector.broadcast %cst_76 : f32 to vector<8x128xf32>
    %214 = arith.mulf %213, %212 : vector<8x128xf32>
    %cst_77 = arith.constant 5.000000e-01 : f32
    %215 = vector.broadcast %cst_77 : f32 to vector<8x128xf32>
    %216 = arith.addf %214, %215 : vector<8x128xf32>
    %217 = arith.mulf %206, %183 : vector<8x128xf32>
    %218 = arith.mulf %198, %208 : vector<8x128xf32>
    %219 = arith.addf %217, %218 : vector<8x128xf32>
    %220 = math.tanh %219 : vector<8x128xf32>
    %221 = arith.mulf %216, %220 : vector<8x128xf32>
    %c6_i32 = arith.constant 6 : i32
    %222 = arith.index_cast %c6_i32 : i32 to index
    %c0_78 = arith.constant 0 : index
    %c0_79 = arith.constant 0 : index
    %223 = vector.load %arg2[%222, %c0_78, %c0_79] : memref<8x8x512xf32, #tpu.memory_space<vmem>>, vector<1x8x512xf32>
    %224 = vector.shape_cast %223 : vector<1x8x512xf32> to vector<8x512xf32>
    %cst_80 = arith.constant dense<0.000000e+00> : vector<8x512xf32>
    %225 = tpu.matmul %221, %3, %cst_80 {dimension_numbers = #tpu.dot_dimension_numbers<[1], [0], [0], [1], [0, 0, 1, 1], [], []>} : vector<8x128xf32>, vector<128x512xf32>, vector<8x512xf32> -> vector<8x512xf32>
    %226 = arith.addf %224, %225 : vector<8x512xf32>
    %227 = vector.extract_strided_slice %226 {offsets = [0, 0], sizes = [8, 128], strides = [1, 1]} : vector<8x512xf32> to vector<8x128xf32>
    %cst_81 = arith.constant 5.000000e-01 : f32
    %228 = vector.broadcast %cst_81 : f32 to vector<8x128xf32>
    %229 = arith.mulf %228, %227 : vector<8x128xf32>
    %230 = math.tanh %229 : vector<8x128xf32>
    %cst_82 = arith.constant 5.000000e-01 : f32
    %231 = vector.broadcast %cst_82 : f32 to vector<8x128xf32>
    %232 = arith.mulf %231, %230 : vector<8x128xf32>
    %cst_83 = arith.constant 5.000000e-01 : f32
    %233 = vector.broadcast %cst_83 : f32 to vector<8x128xf32>
    %234 = arith.addf %232, %233 : vector<8x128xf32>
    %235 = vector.extract_strided_slice %226 {offsets = [0, 128], sizes = [8, 128], strides = [1, 1]} : vector<8x512xf32> to vector<8x128xf32>
    %cst_84 = arith.constant 5.000000e-01 : f32
    %236 = vector.broadcast %cst_84 : f32 to vector<8x128xf32>
    %237 = arith.mulf %236, %235 : vector<8x128xf32>
    %238 = math.tanh %237 : vector<8x128xf32>
    %cst_85 = arith.constant 5.000000e-01 : f32
    %239 = vector.broadcast %cst_85 : f32 to vector<8x128xf32>
    %240 = arith.mulf %239, %238 : vector<8x128xf32>
    %cst_86 = arith.constant 5.000000e-01 : f32
    %241 = vector.broadcast %cst_86 : f32 to vector<8x128xf32>
    %242 = arith.addf %240, %241 : vector<8x128xf32>
    %243 = vector.extract_strided_slice %226 {offsets = [0, 256], sizes = [8, 128], strides = [1, 1]} : vector<8x512xf32> to vector<8x128xf32>
    %244 = math.tanh %243 : vector<8x128xf32>
    %245 = vector.extract_strided_slice %226 {offsets = [0, 384], sizes = [8, 128], strides = [1, 1]} : vector<8x512xf32> to vector<8x128xf32>
    %cst_87 = arith.constant 5.000000e-01 : f32
    %246 = vector.broadcast %cst_87 : f32 to vector<8x128xf32>
    %247 = arith.mulf %246, %245 : vector<8x128xf32>
    %248 = math.tanh %247 : vector<8x128xf32>
    %cst_88 = arith.constant 5.000000e-01 : f32
    %249 = vector.broadcast %cst_88 : f32 to vector<8x128xf32>
    %250 = arith.mulf %249, %248 : vector<8x128xf32>
    %cst_89 = arith.constant 5.000000e-01 : f32
    %251 = vector.broadcast %cst_89 : f32 to vector<8x128xf32>
    %252 = arith.addf %250, %251 : vector<8x128xf32>
    %253 = arith.mulf %242, %219 : vector<8x128xf32>
    %254 = arith.mulf %234, %244 : vector<8x128xf32>
    %255 = arith.addf %253, %254 : vector<8x128xf32>
    %256 = math.tanh %255 : vector<8x128xf32>
    %257 = arith.mulf %252, %256 : vector<8x128xf32>
    %c7_i32 = arith.constant 7 : i32
    %258 = arith.index_cast %c7_i32 : i32 to index
    %c0_90 = arith.constant 0 : index
    %c0_91 = arith.constant 0 : index
    %259 = vector.load %arg2[%258, %c0_90, %c0_91] : memref<8x8x512xf32, #tpu.memory_space<vmem>>, vector<1x8x512xf32>
    %260 = vector.shape_cast %259 : vector<1x8x512xf32> to vector<8x512xf32>
    %cst_92 = arith.constant dense<0.000000e+00> : vector<8x512xf32>
    %261 = tpu.matmul %257, %3, %cst_92 {dimension_numbers = #tpu.dot_dimension_numbers<[1], [0], [0], [1], [0, 0, 1, 1], [], []>} : vector<8x128xf32>, vector<128x512xf32>, vector<8x512xf32> -> vector<8x512xf32>
    %262 = arith.addf %260, %261 : vector<8x512xf32>
    %263 = vector.extract_strided_slice %262 {offsets = [0, 0], sizes = [8, 128], strides = [1, 1]} : vector<8x512xf32> to vector<8x128xf32>
    %cst_93 = arith.constant 5.000000e-01 : f32
    %264 = vector.broadcast %cst_93 : f32 to vector<8x128xf32>
    %265 = arith.mulf %264, %263 : vector<8x128xf32>
    %266 = math.tanh %265 : vector<8x128xf32>
    %cst_94 = arith.constant 5.000000e-01 : f32
    %267 = vector.broadcast %cst_94 : f32 to vector<8x128xf32>
    %268 = arith.mulf %267, %266 : vector<8x128xf32>
    %cst_95 = arith.constant 5.000000e-01 : f32
    %269 = vector.broadcast %cst_95 : f32 to vector<8x128xf32>
    %270 = arith.addf %268, %269 : vector<8x128xf32>
    %271 = vector.extract_strided_slice %262 {offsets = [0, 128], sizes = [8, 128], strides = [1, 1]} : vector<8x512xf32> to vector<8x128xf32>
    %cst_96 = arith.constant 5.000000e-01 : f32
    %272 = vector.broadcast %cst_96 : f32 to vector<8x128xf32>
    %273 = arith.mulf %272, %271 : vector<8x128xf32>
    %274 = math.tanh %273 : vector<8x128xf32>
    %cst_97 = arith.constant 5.000000e-01 : f32
    %275 = vector.broadcast %cst_97 : f32 to vector<8x128xf32>
    %276 = arith.mulf %275, %274 : vector<8x128xf32>
    %cst_98 = arith.constant 5.000000e-01 : f32
    %277 = vector.broadcast %cst_98 : f32 to vector<8x128xf32>
    %278 = arith.addf %276, %277 : vector<8x128xf32>
    %279 = vector.extract_strided_slice %262 {offsets = [0, 256], sizes = [8, 128], strides = [1, 1]} : vector<8x512xf32> to vector<8x128xf32>
    %280 = math.tanh %279 : vector<8x128xf32>
    %281 = vector.extract_strided_slice %262 {offsets = [0, 384], sizes = [8, 128], strides = [1, 1]} : vector<8x512xf32> to vector<8x128xf32>
    %cst_99 = arith.constant 5.000000e-01 : f32
    %282 = vector.broadcast %cst_99 : f32 to vector<8x128xf32>
    %283 = arith.mulf %282, %281 : vector<8x128xf32>
    %284 = math.tanh %283 : vector<8x128xf32>
    %cst_100 = arith.constant 5.000000e-01 : f32
    %285 = vector.broadcast %cst_100 : f32 to vector<8x128xf32>
    %286 = arith.mulf %285, %284 : vector<8x128xf32>
    %cst_101 = arith.constant 5.000000e-01 : f32
    %287 = vector.broadcast %cst_101 : f32 to vector<8x128xf32>
    %288 = arith.addf %286, %287 : vector<8x128xf32>
    %289 = arith.mulf %278, %255 : vector<8x128xf32>
    %290 = arith.mulf %270, %280 : vector<8x128xf32>
    %291 = arith.addf %289, %290 : vector<8x128xf32>
    %292 = math.tanh %291 : vector<8x128xf32>
    %293 = arith.mulf %288, %292 : vector<8x128xf32>
    %c8_i32 = arith.constant 8 : i32
    %c0_102 = arith.constant 0 : index
    %c0_103 = arith.constant 0 : index
    %294 = vector.load %arg5[%c0_102, %c0_103] : memref<8x128xf32, #tpu.memory_space<vmem>>, vector<8x128xf32>
    tpu.vector_store %arg5[%c0_102, %c0_103], %293 {strides = array<i32>} : memref<8x128xf32, #tpu.memory_space<vmem>>, vector<8x128xf32>,
    %c0_104 = arith.constant 0 : index
    %c0_105 = arith.constant 0 : index
    %295 = vector.load %arg6[%c0_104, %c0_105] : memref<8x128xf32, #tpu.memory_space<vmem>>, vector<8x128xf32>
    tpu.vector_store %arg6[%c0_104, %c0_105], %291 {strides = array<i32>} : memref<8x128xf32, #tpu.memory_space<vmem>>, vector<8x128xf32>,
    %c0_i32_106 = arith.constant 0 : i32
    %296 = arith.cmpi eq, %arg1, %c0_i32_106 : i32
    %297 = arith.extui %296 : i1 to i32
    %c0_i32_107 = arith.constant 0 : i32
    %298 = arith.cmpi ne, %297, %c0_i32_107 : i32
    scf.if %298 {
      %c0_108 = arith.constant 0 : index
      %c0_109 = arith.constant 0 : index
      %299 = vector.load %arg5[%c0_108, %c0_109] : memref<8x128xf32, #tpu.memory_space<vmem>>, vector<8x128xf32>
      %c0_110 = arith.constant 0 : index
      %c0_111 = arith.constant 0 : index
      %300 = vector.load %arg4[%c0_110, %c0_111] : memref<8x128xf32, #tpu.memory_space<vmem>>, vector<8x128xf32>
      tpu.vector_store %arg4[%c0_110, %c0_111], %299 {strides = array<i32>} : memref<8x128xf32, #tpu.memory_space<vmem>>, vector<8x128xf32>,
    } else {
    }
    return
  }
  func.func @transform_0(%arg0: i32, %arg1: i32) -> (i32, i32, i32) {
    %c0_i32 = arith.constant 0 : i32
    %c0_i32_0 = arith.constant 0 : i32
    return %arg1, %arg0, %c0_i32 : i32, i32, i32
  }
  func.func @transform_1(%arg0: i32, %arg1: i32) -> (i32, i32) {
    %c0_i32 = arith.constant 0 : i32
    %c0_i32_0 = arith.constant 0 : i32
    %c0_i32_1 = arith.constant 0 : i32
    return %c0_i32, %c0_i32_0 : i32, i32
  }
  func.func @transform_2(%arg0: i32, %arg1: i32) -> (i32, i32) {
    %c0_i32 = arith.constant 0 : i32
    %c0_i32_0 = arith.constant 0 : i32
    return %arg0, %c0_i32 : i32, i32
  }
}

</mosaic_0001>

<llo_original>
// kernel: tpu_custom_call.1
$region0: #{tpu_custom_call.1}
  #allocation0 [shape = 'u32[]', space=smem, size = 0x4, offset = 0x4, fixed_abs, tag = 'smem constant byte address 0x4 - core index']
  #allocation1 [shape = 'u32[144,128]{1,0:T(1,128)}', space=vmem, size = 0x12000, scoped, tag = 'internal scratch']
  #allocation2 [shape = 'f32[8,128]{1,0:T(8,128)}', space=vmem, size = 0x1000, scoped, tag = 'scratch operand']
  #allocation3 [shape = 'f32[8,128]{1,0:T(8,128)}', space=vmem, size = 0x1000, scoped, tag = 'scratch operand']
  %s0 = inlined_call_operand.hbm [shape: f32[8,8,512], index: 0, kind: input, shape index: {}]
  %s1 = inlined_call_operand.hbm [shape: f32[128,512], index: 1, kind: input, shape index: {}]
  %s2 = inlined_call_operand.hbm [shape: f32[8,128], index: 2, kind: output, shape index: {}]
  %s3 = sld [smem:[#allocation0]]
  $region34: #{tpu_custom_call.1} parent=0
    _
  %s5 = ssub.s32 1, %s3
  %s6 = scalar_select 0, %s5, %s3
  $region1: #{tpu_custom_call.1} parent=0
    #allocation4 [shape = 'u8[131072]{0}', space=vmem, size = 0x20000, scoped, tag = 'input window, operand 0, single buffered']
    #allocation5 [shape = 's32[1]{0}', space=sflag, size = 0x4, scoped, tag = 'scoped memory for tpu_custom_call.1']
    #allocation6 [shape = 's32[1]{0}', space=sflag, size = 0x4, scoped, tag = 'scoped memory for tpu_custom_call.1']
    #allocation7 [shape = 'u8[262144]{0}', space=vmem, size = 0x40000, scoped, tag = 'input window, operand 1, single buffered']
    #allocation8 [shape = 's32[1]{0}', space=sflag, size = 0x4, scoped, tag = 'scoped memory for tpu_custom_call.1']
    #allocation9 [shape = 'u8[4096]{0}', space=vmem, size = 0x1000, scoped, tag = 'output window, operand 0, single buffered']
    %7 = vsyncpa [#allocation5], 0
    %8 = vsyncpa [#allocation8], 0
    %9 = vsyncpa [#allocation6], 0
    // Predicated region
    $region2: #{tpu_custom_call.1} parent=1 // pred_check
      _
    $region3: #{tpu_custom_call.1} parent=1 // pred_check_branch
      %11 = sbr.rel (0) target = $region5
    $region4: #{tpu_custom_call.1} parent=1 // pred_region
      %s13 = ssub.s32 4096, 4096
      %14 = vsyncadd [#allocation5], %s13
      %s15 = sshll.u32 [#allocation4], 4
      %s16 = int_to_ptr.vmem [resolvable:$true] %s15
      %21 = dma.hbm_to_vmem [thread:$0]  %s0, 4096, %s16, [#allocation5], 512, 512, 32
    $region5: #{tpu_custom_call.1} parent=1 // pred_fallthru
      _
    // Predicated region
    $region6: #{tpu_custom_call.1} parent=1 // pred_check
      _
    $region7: #{tpu_custom_call.1} parent=1 // pred_check_branch
      %23 = sbr.rel (0) target = $region9
    $region8: #{tpu_custom_call.1} parent=1 // pred_region
      %s25 = ssub.s32 8192, 8192
      %26 = vsyncadd [#allocation8], %s25
      %s27 = sshll.u32 [#allocation7], 4
      %s28 = int_to_ptr.vmem [resolvable:$true] %s27
      %33 = dma.hbm_to_vmem [thread:$0]  %s1, 8192, %s28, [#allocation8], 512, 512, 32
    $region9: #{tpu_custom_call.1} parent=1 // pred_fallthru
      _
    // Predicated region
    $region10: #{tpu_custom_call.1} parent=1 // pred_check
      _
    $region11: #{tpu_custom_call.1} parent=1 // pred_check_branch
      %35 = sbr.rel (0) target = $region13
    $region12: #{tpu_custom_call.1} parent=1 // pred_region
      %36 = dma.done [#allocation5], 4096
    $region13: #{tpu_custom_call.1} parent=1 // pred_fallthru
      _
    // Predicated region
    $region14: #{tpu_custom_call.1} parent=1 // pred_check
      _
    $region15: #{tpu_custom_call.1} parent=1 // pred_check_branch
      %38 = sbr.rel (0) target = $region17
    $region16: #{tpu_custom_call.1} parent=1 // pred_region
      %39 = dma.done [#allocation8], 8192
    $region17: #{tpu_custom_call.1} parent=1 // pred_fallthru
      _
    %p40 = scmp.eq.s32.totalorder 0, 0
    // Predicated region
    $region18: #{tpu_custom_call.1} parent=1 // pred_check
      %p41 = pneg %p40
    $region19: #{tpu_custom_call.1} parent=1 // pred_check_branch
      %43 = sbr.rel (%p41) target = $region21
    $region20: #{tpu_custom_call.1} parent=1 // pred_region
      %44 = vst [vmem:[#allocation2] sm:$0xff] 0.0
      %45 = vst [vmem:[#allocation3] sm:$0xff] 0.0
    $region21: #{tpu_custom_call.1} parent=1 // pred_fallthru
      _
    %v46 = vld [vmem:[#allocation7] sm:$0xff]
    %v47 = vld [vmem:[#allocation7 + $0x8] sm:$0xff]
    %v48 = vld [vmem:[#allocation7 + $0x10] sm:$0xff]
    %v49 = vld [vmem:[#allocation7 + $0x18] sm:$0xff]
    %v50 = vld [vmem:[#allocation7 + $0x20] sm:$0xff]
    %v51 = vld [vmem:[#allocation7 + $0x28] sm:$0xff]
    %v52 = vld [vmem:[#allocation7 + $0x30] sm:$0xff]
    %v53 = vld [vmem:[#allocation7 + $0x38] sm:$0xff]
    %v54 = vld [vmem:[#allocation7 + $0x40] sm:$0xff]
    %v55 = vld [vmem:[#allocation7 + $0x48] sm:$0xff]
    %v56 = vld [vmem:[#allocation7 + $0x50] sm:$0xff]
    %v57 = vld [vmem:[#allocation7 + $0x58] sm:$0xff]
    %v58 = vld [vmem:[#allocation7 + $0x60] sm:$0xff]
    %v59 = vld [vmem:[#allocation7 + $0x68] sm:$0xff]
    %v60 = vld [vmem:[#allocation7 + $0x70] sm:$0xff]
    %v61 = vld [vmem:[#allocation7 + $0x78] sm:$0xff]
    %v62 = vld [vmem:[#allocation7 + $0x80] sm:$0xff]
    %v63 = vld [vmem:[#allocation7 + $0x88] sm:$0xff]
    %v64 = vld [vmem:[#allocation7 + $0x90] sm:$0xff]
    %v65 = vld [vmem:[#allocation7 + $0x98] sm:$0xff]
    %v66 = vld [vmem:[#allocation7 + $0xa0] sm:$0xff]
    %v67 = vld [vmem:[#allocation7 + $0xa8] sm:$0xff]
    %v68 = vld [vmem:[#allocation7 + $0xb0] sm:$0xff]
    %v69 = vld [vmem:[#allocation7 + $0xb8] sm:$0xff]
    %v70 = vld [vmem:[#allocation7 + $0xc0] sm:$0xff]
    %v71 = vld [vmem:[#allocation7 + $0xc8] sm:$0xff]
    %v72 = vld [vmem:[#allocation7 + $0xd0] sm:$0xff]
    %v73 = vld [vmem:[#allocation7 + $0xd8] sm:$0xff]
    %v74 = vld [vmem:[#allocation7 + $0xe0] sm:$0xff]
    %v75 = vld [vmem:[#allocation7 + $0xe8] sm:$0xff]
    %v76 = vld [vmem:[#allocation7 + $0xf0] sm:$0xff]
    %v77 = vld [vmem:[#allocation7 + $0xf8] sm:$0xff]
    %v78 = vld [vmem:[#allocation7 + $0x100] sm:$0xff]
    %v79 = vld [vmem:[#allocation7 + $0x108] sm:$0xff]
    %v80 = vld [vmem:[#allocation7 + $0x110] sm:$0xff]
    %v81 = vld [vmem:[#allocation7 + $0x118] sm:$0xff]
    %v82 = vld [vmem:[#allocation7 + $0x120] sm:$0xff]
    %v83 = vld [vmem:[#allocation7 + $0x128] sm:$0xff]
    %v84 = vld [vmem:[#allocation7 + $0x130] sm:$0xff]
    %v85 = vld [vmem:[#allocation7 + $0x138] sm:$0xff]
    %v86 = vld [vmem:[#allocation7 + $0x140] sm:$0xff]
    %v87 = vld [vmem:[#allocation7 + $0x148] sm:$0xff]
    %v88 = vld [vmem:[#allocation7 + $0x150] sm:$0xff]
    %v89 = vld [vmem:[#allocation7 + $0x158] sm:$0xff]
    %v90 = vld [vmem:[#allocation7 + $0x160] sm:$0xff]
    %v91 = vld [vmem:[#allocation7 + $0x168] sm:$0xff]
    %v92 = vld [vmem:[#allocation7 + $0x170] sm:$0xff]
    %v93 = vld [vmem:[#allocation7 + $0x178] sm:$0xff]
    %v94 = vld [vmem:[#allocation7 + $0x180] sm:$0xff]
    %v95 = vld [vmem:[#allocation7 + $0x188] sm:$0xff]
    %v96 = vld [vmem:[#allocation7 + $0x190] sm:$0xff]
    %v97 = vld [vmem:[#allocation7 + $0x198] sm:$0xff]
    %v98 = vld [vmem:[#allocation7 + $0x1a0] sm:$0xff]
    %v99 = vld [vmem:[#allocation7 + $0x1a8] sm:$0xff]
    %v100 = vld [vmem:[#allocation7 + $0x1b0] sm:$0xff]
    %v101 = vld [vmem:[#allocation7 + $0x1b8] sm:$0xff]
    %v102 = vld [vmem:[#allocation7 + $0x1c0] sm:$0xff]
    %v103 = vld [vmem:[#allocation7 + $0x1c8] sm:$0xff]
    %v104 = vld [vmem:[#allocation7 + $0x1d0] sm:$0xff]
    %v105 = vld [vmem:[#allocation7 + $0x1d8] sm:$0xff]
    %v106 = vld [vmem:[#allocation7 + $0x1e0] sm:$0xff]
    %v107 = vld [vmem:[#allocation7 + $0x1e8] sm:$0xff]
    %v108 = vld [vmem:[#allocation7 + $0x1f0] sm:$0xff]
    %v109 = vld [vmem:[#allocation7 + $0x1f8] sm:$0xff]
    %v110 = vld [vmem:[#allocation2] sm:$0xff]
    %v111 = vld [vmem:[#allocation3] sm:$0xff]
    %v112 = vld [vmem:[#allocation4] sm:$0xff]
    %v113 = vld [vmem:[#allocation4 + $0x8] sm:$0xff]
    %v114 = vld [vmem:[#allocation4 + $0x10] sm:$0xff]
    %v115 = vld [vmem:[#allocation4 + $0x18] sm:$0xff]
    %116 = vmatprep.subr.mxu0 %v47
    %117 = vmatpush1.msra.mxu0 %v46
    %118 = vmatprep.subr.mxu0 %v51
    %119 = vmatpush1.msra.mxu0 %v50
    %120 = vmatprep.subr.mxu0 %v55
    %121 = vmatpush1.msra.mxu0 %v54
    %122 = vmatprep.subr.mxu0 %v59
    %123 = vmatpush1.msra.mxu0 %v58
    %124 = vmatprep.subr.mxu0 %v63
    %125 = vmatpush1.msra.mxu0 %v62
    %126 = vmatprep.subr.mxu0 %v67
    %127 = vmatpush1.msra.mxu0 %v66
    %128 = vmatprep.subr.mxu0 %v71
    %129 = vmatpush1.msra.mxu0 %v70
    %130 = vmatprep.subr.mxu0 %v75
    %131 = vmatpush1.msra.mxu0 %v74
    %132 = vmatprep.subr.mxu0 %v79
    %133 = vmatpush1.msra.mxu0 %v78
    %134 = vmatprep.subr.mxu0 %v83
    %135 = vmatpush1.msra.mxu0 %v82
    %136 = vmatprep.subr.mxu0 %v87
    %137 = vmatpush1.msra.mxu0 %v86
    %138 = vmatprep.subr.mxu0 %v91
    %139 = vmatpush1.msra.mxu0 %v90
    %140 = vmatprep.subr.mxu0 %v95
    %141 = vmatpush1.msra.mxu0 %v94
    %142 = vmatprep.subr.mxu0 %v99
    %143 = vmatpush1.msra.mxu0 %v98
    %144 = vmatprep.subr.mxu0 %v103
    %145 = vmatpush1.msra.mxu0 %v102
    %146 = vmatprep.subr.mxu0 %v107
    %147 = vmatpush1.msra.mxu0 %v106
    %148 = vmatprep.subr.mxu0 0.0
    %149 = vmatpush1.msra.mxu0 0.0
    %150 = vmatprep.subr.mxu0 0.0
    %151 = vmatpush1.msra.mxu0 0.0
    %152 = vmatprep.subr.mxu0 0.0
    %153 = vmatpush1.msra.mxu0 0.0
    %154 = vmatprep.subr.mxu0 0.0
    %155 = vmatpush1.msra.mxu0 0.0
    %156 = vmatprep.subr.mxu0 0.0
    %157 = vmatpush1.msra.mxu0 0.0
    %158 = vmatprep.subr.mxu0 0.0
    %159 = vmatpush1.msra.mxu0 0.0
    %160 = vmatprep.subr.mxu0 0.0
    %161 = vmatpush1.msra.mxu0 0.0
    %162 = vmatprep.subr.mxu0 0.0
    %163 = vmatpush1.msra.mxu0 0.0
    %164 = vmatprep.subr.mxu0 0.0
    %165 = vmatpush1.msra.mxu0 0.0
    %166 = vmatprep.subr.mxu0 0.0
    %167 = vmatpush1.msra.mxu0 0.0
    %168 = vmatprep.subr.mxu0 0.0
    %169 = vmatpush1.msra.mxu0 0.0
    %170 = vmatprep.subr.mxu0 0.0
    %171 = vmatpush1.msra.mxu0 0.0
    %172 = vmatprep.subr.mxu0 0.0
    %173 = vmatpush1.msra.mxu0 0.0
    %174 = vmatprep.subr.mxu0 0.0
    %175 = vmatpush1.msra.mxu0 0.0
    %176 = vmatprep.subr.mxu0 0.0
    %177 = vmatpush1.msra.mxu0 0.0
    %178 = vmatprep.subr.mxu0 0.0
    %179 = vmatpush1.msra.mxu0 0.0
    %180 = vmatprep.mubr.f32.mxu0 0.0
    %181 = vmatmul.mubr.f32.gmra.mrb[0].mxu0 %v110
    %v182 = vpop.f32.mrb[0].mxu0
    %v183 = vadd.f32 0.0, %v182
    %v184 = vpop.f32.mrb[0].mxu0
    %v185 = vadd.f32 0.0, %v184
    %186 = vdwg.mxu0
    %187 = vmatprep.subr.mxu0 %v49
    %188 = vmatpush1.msra.mxu0 %v48
    %189 = vmatprep.subr.mxu0 %v53
    %190 = vmatpush1.msra.mxu0 %v52
    %191 = vmatprep.subr.mxu0 %v57
    %192 = vmatpush1.msra.mxu0 %v56
    %193 = vmatprep.subr.mxu0 %v61
    %194 = vmatpush1.msra.mxu0 %v60
    %195 = vmatprep.subr.mxu0 %v65
    %196 = vmatpush1.msra.mxu0 %v64
    %197 = vmatprep.subr.mxu0 %v69
    %198 = vmatpush1.msra.mxu0 %v68
    %199 = vmatprep.subr.mxu0 %v73
    %200 = vmatpush1.msra.mxu0 %v72
    %201 = vmatprep.subr.mxu0 %v77
    %202 = vmatpush1.msra.mxu0 %v76
    %203 = vmatprep.subr.mxu0 %v81
    %204 = vmatpush1.msra.mxu0 %v80
    %205 = vmatprep.subr.mxu0 %v85
    %206 = vmatpush1.msra.mxu0 %v84
    %207 = vmatprep.subr.mxu0 %v89
    %208 = vmatpush1.msra.mxu0 %v88
    %209 = vmatprep.subr.mxu0 %v93
    %210 = vmatpush1.msra.mxu0 %v92
    %211 = vmatprep.subr.mxu0 %v97
    %212 = vmatpush1.msra.mxu0 %v96
    %213 = vmatprep.subr.mxu0 %v101
    %214 = vmatpush1.msra.mxu0 %v100
    %215 = vmatprep.subr.mxu0 %v105
    %216 = vmatpush1.msra.mxu0 %v104
    %217 = vmatprep.subr.mxu0 %v109
    %218 = vmatpush1.msra.mxu0 %v108
    %219 = vmatprep.subr.mxu0 0.0
    %220 = vmatpush1.msra.mxu0 0.0
    %221 = vmatprep.subr.mxu0 0.0
    %222 = vmatpush1.msra.mxu0 0.0
    %223 = vmatprep.subr.mxu0 0.0
    %224 = vmatpush1.msra.mxu0 0.0
    %225 = vmatprep.subr.mxu0 0.0
    %226 = vmatpush1.msra.mxu0 0.0
    %227 = vmatprep.subr.mxu0 0.0
    %228 = vmatpush1.msra.mxu0 0.0
    %229 = vmatprep.subr.mxu0 0.0
    %230 = vmatpush1.msra.mxu0 0.0
    %231 = vmatprep.subr.mxu0 0.0
    %232 = vmatpush1.msra.mxu0 0.0
    %233 = vmatprep.subr.mxu0 0.0
    %234 = vmatpush1.msra.mxu0 0.0
    %235 = vmatprep.subr.mxu0 0.0
    %236 = vmatpush1.msra.mxu0 0.0
    %237 = vmatprep.subr.mxu0 0.0
    %238 = vmatpush1.msra.mxu0 0.0
    %239 = vmatprep.subr.mxu0 0.0
    %240 = vmatpush1.msra.mxu0 0.0
    %241 = vmatprep.subr.mxu0 0.0
    %242 = vmatpush1.msra.mxu0 0.0
    %243 = vmatprep.subr.mxu0 0.0
    %244 = vmatpush1.msra.mxu0 0.0
    %245 = vmatprep.subr.mxu0 0.0
    %246 = vmatpush1.msra.mxu0 0.0
    %247 = vmatprep.subr.mxu0 0.0
    %248 = vmatpush1.msra.mxu0 0.0
    %249 = vmatprep.subr.mxu0 0.0
    %250 = vmatpush1.msra.mxu0 0.0
    %251 = vmatprep.mubr.f32.mxu0 0.0
    %252 = vmatmul.mubr.f32.gmra.mrb[0].mxu0 %v110
    %v253 = vpop.f32.mrb[0].mxu0
    %v254 = vadd.f32 0.0, %v253
    %v255 = vpop.f32.mrb[0].mxu0
    %v256 = vadd.f32 0.0, %v255
    %257 = vdwg.mxu0
    %v258 = vadd.f32 %v112, %v183
    %v259 = vadd.f32 %v113, %v185
    %v260 = vadd.f32 %v114, %v254
    %v261 = vadd.f32 %v115, %v256
    %v262 = vmul.f32 %v258, 0.5
    %v263 = vtanh.pop %v262
    %v264 = vmul.f32 %v263, 0.5
    %v265 = vadd.f32 %v264, 0.5
    %v266 = vmul.f32 %v259, 0.5
    %v267 = vtanh.pop %v266
    %v268 = vmul.f32 %v267, 0.5
    %v269 = vadd.f32 %v268, 0.5
    %v270 = vtanh.pop %v260
    %v271 = vmul.f32 %v261, 0.5
    %v272 = vtanh.pop %v271
    %v273 = vmul.f32 %v272, 0.5
    %v274 = vadd.f32 %v273, 0.5
    %v275 = vmul.f32 %v269, %v111
    %v276 = vmul.f32 %v265, %v270
    %v277 = vadd.f32 %v275, %v276
    %v278 = vtanh.pop %v277
    %v279 = vmul.f32 %v274, %v278
    %s280 = scalar_lea.vmem [#allocation4], 32
    %v281 = vld [vmem:[%s280] sm:$0xff]
    %v282 = vld [vmem:[%s280 + $0x8] sm:$0xff]
    %v283 = vld [vmem:[%s280 + $0x10] sm:$0xff]
    %v284 = vld [vmem:[%s280 + $0x18] sm:$0xff]
    %285 = vmatprep.subr.mxu0 %v47
    %286 = vmatpush1.msra.mxu0 %v46
    %287 = vmatprep.subr.mxu0 %v51
    %288 = vmatpush1.msra.mxu0 %v50
    %289 = vmatprep.subr.mxu0 %v55
    %290 = vmatpush1.msra.mxu0 %v54
    %291 = vmatprep.subr.mxu0 %v59
    %292 = vmatpush1.msra.mxu0 %v58
    %293 = vmatprep.subr.mxu0 %v63
    %294 = vmatpush1.msra.mxu0 %v62
    %295 = vmatprep.subr.mxu0 %v67
    %296 = vmatpush1.msra.mxu0 %v66
    %297 = vmatprep.subr.mxu0 %v71
    %298 = vmatpush1.msra.mxu0 %v70
    %299 = vmatprep.subr.mxu0 %v75
    %300 = vmatpush1.msra.mxu0 %v74
    %301 = vmatprep.subr.mxu0 %v79
    %302 = vmatpush1.msra.mxu0 %v78
    %303 = vmatprep.subr.mxu0 %v83
    %304 = vmatpush1.msra.mxu0 %v82
    %305 = vmatprep.subr.mxu0 %v87
    %306 = vmatpush1.msra.mxu0 %v86
    %307 = vmatprep.subr.mxu0 %v91
    %308 = vmatpush1.msra.mxu0 %v90
    %309 = vmatprep.subr.mxu0 %v95
    %310 = vmatpush1.msra.mxu0 %v94
    %311 = vmatprep.subr.mxu0 %v99
    %312 = vmatpush1.msra.mxu0 %v98
    %313 = vmatprep.subr.mxu0 %v103
    %314 = vmatpush1.msra.mxu0 %v102
    %315 = vmatprep.subr.mxu0 %v107
    %316 = vmatpush1.msra.mxu0 %v106
    %317 = vmatprep.subr.mxu0 0.0
    %318 = vmatpush1.msra.mxu0 0.0
    %319 = vmatprep.subr.mxu0 0.0
    %320 = vmatpush1.msra.mxu0 0.0
    %321 = vmatprep.subr.mxu0 0.0
    %322 = vmatpush1.msra.mxu0 0.0
    %323 = vmatprep.subr.mxu0 0.0
    %324 = vmatpush1.msra.mxu0 0.0
    %325 = vmatprep.subr.mxu0 0.0
    %326 = vmatpush1.msra.mxu0 0.0
    %327 = vmatprep.subr.mxu0 0.0
    %328 = vmatpush1.msra.mxu0 0.0
    %329 = vmatprep.subr.mxu0 0.0
    %330 = vmatpush1.msra.mxu0 0.0
    %331 = vmatprep.subr.mxu0 0.0
    %332 = vmatpush1.msra.mxu0 0.0
    %333 = vmatprep.subr.mxu0 0.0
    %334 = vmatpush1.msra.mxu0 0.0
    %335 = vmatprep.subr.mxu0 0.0
    %336 = vmatpush1.msra.mxu0 0.0
    %337 = vmatprep.subr.mxu0 0.0
    %338 = vmatpush1.msra.mxu0 0.0
    %339 = vmatprep.subr.mxu0 0.0
    %340 = vmatpush1.msra.mxu0 0.0
    %341 = vmatprep.subr.mxu0 0.0
    %342 = vmatpush1.msra.mxu0 0.0
    %343 = vmatprep.subr.mxu0 0.0
    %344 = vmatpush1.msra.mxu0 0.0
    %345 = vmatprep.subr.mxu0 0.0
    %346 = vmatpush1.msra.mxu0 0.0
    %347 = vmatprep.subr.mxu0 0.0
    %348 = vmatpush1.msra.mxu0 0.0
    %349 = vmatprep.mubr.f32.mxu0 0.0
    %350 = vmatmul.mubr.f32.gmra.mrb[0].mxu0 %v279
    %v351 = vpop.f32.mrb[0].mxu0
    %v352 = vadd.f32 0.0, %v351
    %v353 = vpop.f32.mrb[0].mxu0
    %v354 = vadd.f32 0.0, %v353
    %355 = vdwg.mxu0
    %356 = vmatprep.subr.mxu0 %v49
    %357 = vmatpush1.msra.mxu0 %v48
    %358 = vmatprep.subr.mxu0 %v53
    %359 = vmatpush1.msra.mxu0 %v52
    %360 = vmatprep.subr.mxu0 %v57
    %361 = vmatpush1.msra.mxu0 %v56
    %362 = vmatprep.subr.mxu0 %v61
    %363 = vmatpush1.msra.mxu0 %v60
    %364 = vmatprep.subr.mxu0 %v65
    %365 = vmatpush1.msra.mxu0 %v64
    %366 = vmatprep.subr.mxu0 %v69
    %367 = vmatpush1.msra.mxu0 %v68
    %368 = vmatprep.subr.mxu0 %v73
    %369 = vmatpush1.msra.mxu0 %v72
    %370 = vmatprep.subr.mxu0 %v77
    %371 = vmatpush1.msra.mxu0 %v76
    %372 = vmatprep.subr.mxu0 %v81
    %373 = vmatpush1.msra.mxu0 %v80
    %374 = vmatprep.subr.mxu0 %v85
    %375 = vmatpush1.msra.mxu0 %v84
    %376 = vmatprep.subr.mxu0 %v89
    %377 = vmatpush1.msra.mxu0 %v88
    %378 = vmatprep.subr.mxu0 %v93
    %379 = vmatpush1.msra.mxu0 %v92
    %380 = vmatprep.subr.mxu0 %v97
    %381 = vmatpush1.msra.mxu0 %v96
    %382 = vmatprep.subr.mxu0 %v101
    %383 = vmatpush1.msra.mxu0 %v100
    %384 = vmatprep.subr.mxu0 %v105
    %385 = vmatpush1.msra.mxu0 %v104
    %386 = vmatprep.subr.mxu0 %v109
    %387 = vmatpush1.msra.mxu0 %v108
    %388 = vmatprep.subr.mxu0 0.0
    %389 = vmatpush1.msra.mxu0 0.0
    %390 = vmatprep.subr.mxu0 0.0
    %391 = vmatpush1.msra.mxu0 0.0
    %392 = vmatprep.subr.mxu0 0.0
    %393 = vmatpush1.msra.mxu0 0.0
    %394 = vmatprep.subr.mxu0 0.0
    %395 = vmatpush1.msra.mxu0 0.0
    %396 = vmatprep.subr.mxu0 0.0
    %397 = vmatpush1.msra.mxu0 0.0
    %398 = vmatprep.subr.mxu0 0.0
    %399 = vmatpush1.msra.mxu0 0.0
    %400 = vmatprep.subr.mxu0 0.0
    %401 = vmatpush1.msra.mxu0 0.0
    %402 = vmatprep.subr.mxu0 0.0
    %403 = vmatpush1.msra.mxu0 0.0
    %404 = vmatprep.subr.mxu0 0.0
    %405 = vmatpush1.msra.mxu0 0.0
    %406 = vmatprep.subr.mxu0 0.0
    %407 = vmatpush1.msra.mxu0 0.0
    %408 = vmatprep.subr.mxu0 0.0
    %409 = vmatpush1.msra.mxu0 0.0
    %410 = vmatprep.subr.mxu0 0.0
    %411 = vmatpush1.msra.mxu0 0.0
    %412 = vmatprep.subr.mxu0 0.0
    %413 = vmatpush1.msra.mxu0 0.0
    %414 = vmatprep.subr.mxu0 0.0
    %415 = vmatpush1.msra.mxu0 0.0
    %416 = vmatprep.subr.mxu0 0.0
    %417 = vmatpush1.msra.mxu0 0.0
    %418 = vmatprep.subr.mxu0 0.0
    %419 = vmatpush1.msra.mxu0 0.0
    %420 = vmatprep.mubr.f32.mxu0 0.0
    %421 = vmatmul.mubr.f32.gmra.mrb[0].mxu0 %v279
    %v422 = vpop.f32.mrb[0].mxu0
    %v423 = vadd.f32 0.0, %v422
    %v424 = vpop.f32.mrb[0].mxu0
    %v425 = vadd.f32 0.0, %v424
    %426 = vdwg.mxu0
    %v427 = vadd.f32 %v281, %v352
    %v428 = vadd.f32 %v282, %v354
    %v429 = vadd.f32 %v283, %v423
    %v430 = vadd.f32 %v284, %v425
    %v431 = vmul.f32 %v427, 0.5
    %v432 = vtanh.pop %v431
    %v433 = vmul.f32 %v432, 0.5
    %v434 = vadd.f32 %v433, 0.5
    %v435 = vmul.f32 %v428, 0.5
    %v436 = vtanh.pop %v435
    %v437 = vmul.f32 %v436, 0.5
    %v438 = vadd.f32 %v437, 0.5
    %v439 = vtanh.pop %v429
    %v440 = vmul.f32 %v430, 0.5
    %v441 = vtanh.pop %v440
    %v442 = vmul.f32 %v441, 0.5
    %v443 = vadd.f32 %v442, 0.5
    %v444 = vmul.f32 %v438, %v277
    %v445 = vmul.f32 %v434, %v439
    %v446 = vadd.f32 %v444, %v445
    %v447 = vtanh.pop %v446
    %v448 = vmul.f32 %v443, %v447
    %s449 = scalar_lea.vmem [#allocation4], 64
    %v450 = vld [vmem:[%s449] sm:$0xff]
    %v451 = vld [vmem:[%s449 + $0x8] sm:$0xff]
    %v452 = vld [vmem:[%s449 + $0x10] sm:$0xff]
    %v453 = vld [vmem:[%s449 + $0x18] sm:$0xff]
    %454 = vmatprep.subr.mxu0 %v47
    %455 = vmatpush1.msra.mxu0 %v46
    %456 = vmatprep.subr.mxu0 %v51
    %457 = vmatpush1.msra.mxu0 %v50
    %458 = vmatprep.subr.mxu0 %v55
    %459 = vmatpush1.msra.mxu0 %v54
    %460 = vmatprep.subr.mxu0 %v59
    %461 = vmatpush1.msra.mxu0 %v58
    %462 = vmatprep.subr.mxu0 %v63
    %463 = vmatpush1.msra.mxu0 %v62
    %464 = vmatprep.subr.mxu0 %v67
    %465 = vmatpush1.msra.mxu0 %v66
    %466 = vmatprep.subr.mxu0 %v71
    %467 = vmatpush1.msra.mxu0 %v70
    %468 = vmatprep.subr.mxu0 %v75
    %469 = vmatpush1.msra.mxu0 %v74
    %470 = vmatprep.subr.mxu0 %v79
    %471 = vmatpush1.msra.mxu0 %v78
    %472 = vmatprep.subr.mxu0 %v83
    %473 = vmatpush1.msra.mxu0 %v82
    %474 = vmatprep.subr.mxu0 %v87
    %475 = vmatpush1.msra.mxu0 %v86
    %476 = vmatprep.subr.mxu0 %v91
    %477 = vmatpush1.msra.mxu0 %v90
    %478 = vmatprep.subr.mxu0 %v95
    %479 = vmatpush1.msra.mxu0 %v94
    %480 = vmatprep.subr.mxu0 %v99
    %481 = vmatpush1.msra.mxu0 %v98
    %482 = vmatprep.subr.mxu0 %v103
    %483 = vmatpush1.msra.mxu0 %v102
    %484 = vmatprep.subr.mxu0 %v107
    %485 = vmatpush1.msra.mxu0 %v106
    %486 = vmatprep.subr.mxu0 0.0
    %487 = vmatpush1.msra.mxu0 0.0
    %488 = vmatprep.subr.mxu0 0.0
    %489 = vmatpush1.msra.mxu0 0.0
    %490 = vmatprep.subr.mxu0 0.0
    %491 = vmatpush1.msra.mxu0 0.0
    %492 = vmatprep.subr.mxu0 0.0
    %493 = vmatpush1.msra.mxu0 0.0
    %494 = vmatprep.subr.mxu0 0.0
    %495 = vmatpush1.msra.mxu0 0.0
    %496 = vmatprep.subr.mxu0 0.0
    %497 = vmatpush1.msra.mxu0 0.0
    %498 = vmatprep.subr.mxu0 0.0
    %499 = vmatpush1.msra.mxu0 0.0
    %500 = vmatprep.subr.mxu0 0.0
    %501 = vmatpush1.msra.mxu0 0.0
    %502 = vmatprep.subr.mxu0 0.0
    %503 = vmatpush1.msra.mxu0 0.0
    %504 = vmatprep.subr.mxu0 0.0
    %505 = vmatpush1.msra.mxu0 0.0
    %506 = vmatprep.subr.mxu0 0.0
    %507 = vmatpush1.msra.mxu0 0.0
    %508 = vmatprep.subr.mxu0 0.0
    %509 = vmatpush1.msra.mxu0 0.0
    %510 = vmatprep.subr.mxu0 0.0
    %511 = vmatpush1.msra.mxu0 0.0
    %512 = vmatprep.subr.mxu0 0.0
    %513 = vmatpush1.msra.mxu0 0.0
    %514 = vmatprep.subr.mxu0 0.0
    %515 = vmatpush1.msra.mxu0 0.0
    %516 = vmatprep.subr.mxu0 0.0
    %517 = vmatpush1.msra.mxu0 0.0
    %518 = vmatprep.mubr.f32.mxu0 0.0
    %519 = vmatmul.mubr.f32.gmra.mrb[0].mxu0 %v448
    %v520 = vpop.f32.mrb[0].mxu0
    %v521 = vadd.f32 0.0, %v520
    %v522 = vpop.f32.mrb[0].mxu0
    %v523 = vadd.f32 0.0, %v522
    %524 = vdwg.mxu0
    %525 = vmatprep.subr.mxu0 %v49
    %526 = vmatpush1.msra.mxu0 %v48
    %527 = vmatprep.subr.mxu0 %v53
    %528 = vmatpush1.msra.mxu0 %v52
    %529 = vmatprep.subr.mxu0 %v57
    %530 = vmatpush1.msra.mxu0 %v56
    %531 = vmatprep.subr.mxu0 %v61
    %532 = vmatpush1.msra.mxu0 %v60
    %533 = vmatprep.subr.mxu0 %v65
    %534 = vmatpush1.msra.mxu0 %v64
    %535 = vmatprep.subr.mxu0 %v69
    %536 = vmatpush1.msra.mxu0 %v68
    %537 = vmatprep.subr.mxu0 %v73
    %538 = vmatpush1.msra.mxu0 %v72
    %539 = vmatprep.subr.mxu0 %v77
    %540 = vmatpush1.msra.mxu0 %v76
    %541 = vmatprep.subr.mxu0 %v81
    %542 = vmatpush1.msra.mxu0 %v80
    %543 = vmatprep.subr.mxu0 %v85
    %544 = vmatpush1.msra.mxu0 %v84
    %545 = vmatprep.subr.mxu0 %v89
    %546 = vmatpush1.msra.mxu0 %v88
    %547 = vmatprep.subr.mxu0 %v93
    %548 = vmatpush1.msra.mxu0 %v92
    %549 = vmatprep.subr.mxu0 %v97
    %550 = vmatpush1.msra.mxu0 %v96
    %551 = vmatprep.subr.mxu0 %v101
    %552 = vmatpush1.msra.mxu0 %v100
    %553 = vmatprep.subr.mxu0 %v105
    %554 = vmatpush1.msra.mxu0 %v104
    %555 = vmatprep.subr.mxu0 %v109
    %556 = vmatpush1.msra.mxu0 %v108
    %557 = vmatprep.subr.mxu0 0.0
    %558 = vmatpush1.msra.mxu0 0.0
    %559 = vmatprep.subr.mxu0 0.0
    %560 = vmatpush1.msra.mxu0 0.0
    %561 = vmatprep.subr.mxu0 0.0
    %562 = vmatpush1.msra.mxu0 0.0
    %563 = vmatprep.subr.mxu0 0.0
    %564 = vmatpush1.msra.mxu0 0.0
    %565 = vmatprep.subr.mxu0 0.0
    %566 = vmatpush1.msra.mxu0 0.0
    %567 = vmatprep.subr.mxu0 0.0
    %568 = vmatpush1.msra.mxu0 0.0
    %569 = vmatprep.subr.mxu0 0.0
    %570 = vmatpush1.msra.mxu0 0.0
    %571 = vmatprep.subr.mxu0 0.0
    %572 = vmatpush1.msra.mxu0 0.0
    %573 = vmatprep.subr.mxu0 0.0
    %574 = vmatpush1.msra.mxu0 0.0
    %575 = vmatprep.subr.mxu0 0.0
    %576 = vmatpush1.msra.mxu0 0.0
    %577 = vmatprep.subr.mxu0 0.0
    %578 = vmatpush1.msra.mxu0 0.0
    %579 = vmatprep.subr.mxu0 0.0
    %580 = vmatpush1.msra.mxu0 0.0
    %581 = vmatprep.subr.mxu0 0.0
    %582 = vmatpush1.msra.mxu0 0.0
    %583 = vmatprep.subr.mxu0 0.0
    %584 = vmatpush1.msra.mxu0 0.0
    %585 = vmatprep.subr.mxu0 0.0
    %586 = vmatpush1.msra.mxu0 0.0
    %587 = vmatprep.subr.mxu0 0.0
    %588 = vmatpush1.msra.mxu0 0.0
    %589 = vmatprep.mubr.f32.mxu0 0.0
    %590 = vmatmul.mubr.f32.gmra.mrb[0].mxu0 %v448
    %v591 = vpop.f32.mrb[0].mxu0
    %v592 = vadd.f32 0.0, %v591
    %v593 = vpop.f32.mrb[0].mxu0
    %v594 = vadd.f32 0.0, %v593
    %595 = vdwg.mxu0
    %v596 = vadd.f32 %v450, %v521
    %v597 = vadd.f32 %v451, %v523
    %v598 = vadd.f32 %v452, %v592
    %v599 = vadd.f32 %v453, %v594
    %v600 = vmul.f32 %v596, 0.5
    %v601 = vtanh.pop %v600
    %v602 = vmul.f32 %v601, 0.5
    %v603 = vadd.f32 %v602, 0.5
    %v604 = vmul.f32 %v597, 0.5
    %v605 = vtanh.pop %v604
    %v606 = vmul.f32 %v605, 0.5
    %v607 = vadd.f32 %v606, 0.5
    %v608 = vtanh.pop %v598
    %v609 = vmul.f32 %v599, 0.5
    %v610 = vtanh.pop %v609
    %v611 = vmul.f32 %v610, 0.5
    %v612 = vadd.f32 %v611, 0.5
    %v613 = vmul.f32 %v607, %v446
    %v614 = vmul.f32 %v603, %v608
    %v615 = vadd.f32 %v613, %v614
    %v616 = vtanh.pop %v615
    %v617 = vmul.f32 %v612, %v616
    %s618 = scalar_lea.vmem [#allocation4], 96
    %v619 = vld [vmem:[%s618] sm:$0xff]
    %v620 = vld [vmem:[%s618 + $0x8] sm:$0xff]
    %v621 = vld [vmem:[%s618 + $0x10] sm:$0xff]
    %v622 = vld [vmem:[%s618 + $0x18] sm:$0xff]
    %623 = vmatprep.subr.mxu0 %v47
    %624 = vmatpush1.msra.mxu0 %v46
    %625 = vmatprep.subr.mxu0 %v51
    %626 = vmatpush1.msra.mxu0 %v50
    %627 = vmatprep.subr.mxu0 %v55
    %628 = vmatpush1.msra.mxu0 %v54
    %629 = vmatprep.subr.mxu0 %v59
    %630 = vmatpush1.msra.mxu0 %v58
    %631 = vmatprep.subr.mxu0 %v63
    %632 = vmatpush1.msra.mxu0 %v62
    %633 = vmatprep.subr.mxu0 %v67
    %634 = vmatpush1.msra.mxu0 %v66
    %635 = vmatprep.subr.mxu0 %v71
    %636 = vmatpush1.msra.mxu0 %v70
    %637 = vmatprep.subr.mxu0 %v75
    %638 = vmatpush1.msra.mxu0 %v74
    %639 = vmatprep.subr.mxu0 %v79
    %640 = vmatpush1.msra.mxu0 %v78
    %641 = vmatprep.subr.mxu0 %v83
    %642 = vmatpush1.msra.mxu0 %v82
    %643 = vmatprep.subr.mxu0 %v87
    %644 = vmatpush1.msra.mxu0 %v86
    %645 = vmatprep.subr.mxu0 %v91
    %646 = vmatpush1.msra.mxu0 %v90
    %647 = vmatprep.subr.mxu0 %v95
    %648 = vmatpush1.msra.mxu0 %v94
    %649 = vmatprep.subr.mxu0 %v99
    %650 = vmatpush1.msra.mxu0 %v98
    %651 = vmatprep.subr.mxu0 %v103
    %652 = vmatpush1.msra.mxu0 %v102
    %653 = vmatprep.subr.mxu0 %v107
    %654 = vmatpush1.msra.mxu0 %v106
    %655 = vmatprep.subr.mxu0 0.0
    %656 = vmatpush1.msra.mxu0 0.0
    %657 = vmatprep.subr.mxu0 0.0
    %658 = vmatpush1.msra.mxu0 0.0
    %659 = vmatprep.subr.mxu0 0.0
    %660 = vmatpush1.msra.mxu0 0.0
    %661 = vmatprep.subr.mxu0 0.0
    %662 = vmatpush1.msra.mxu0 0.0
    %663 = vmatprep.subr.mxu0 0.0
    %664 = vmatpush1.msra.mxu0 0.0
    %665 = vmatprep.subr.mxu0 0.0
    %666 = vmatpush1.msra.mxu0 0.0
    %667 = vmatprep.subr.mxu0 0.0
    %668 = vmatpush1.msra.mxu0 0.0
    %669 = vmatprep.subr.mxu0 0.0
    %670 = vmatpush1.msra.mxu0 0.0
    %671 = vmatprep.subr.mxu0 0.0
    %672 = vmatpush1.msra.mxu0 0.0
    %673 = vmatprep.subr.mxu0 0.0
    %674 = vmatpush1.msra.mxu0 0.0
    %675 = vmatprep.subr.mxu0 0.0
    %676 = vmatpush1.msra.mxu0 0.0
    %677 = vmatprep.subr.mxu0 0.0
    %678 = vmatpush1.msra.mxu0 0.0
    %679 = vmatprep.subr.mxu0 0.0
    %680 = vmatpush1.msra.mxu0 0.0
    %681 = vmatprep.subr.mxu0 0.0
    %682 = vmatpush1.msra.mxu0 0.0
    %683 = vmatprep.subr.mxu0 0.0
    %684 = vmatpush1.msra.mxu0 0.0
    %685 = vmatprep.subr.mxu0 0.0
    %686 = vmatpush1.msra.mxu0 0.0
    %687 = vmatprep.mubr.f32.mxu0 0.0
    %688 = vmatmul.mubr.f32.gmra.mrb[0].mxu0 %v617
    %v689 = vpop.f32.mrb[0].mxu0
    %v690 = vadd.f32 0.0, %v689
    %v691 = vpop.f32.mrb[0].mxu0
    %v692 = vadd.f32 0.0, %v691
    %693 = vdwg.mxu0
    %694 = vmatprep.subr.mxu0 %v49
    %695 = vmatpush1.msra.mxu0 %v48
    %696 = vmatprep.subr.mxu0 %v53
    %697 = vmatpush1.msra.mxu0 %v52
    %698 = vmatprep.subr.mxu0 %v57
    %699 = vmatpush1.msra.mxu0 %v56
    %700 = vmatprep.subr.mxu0 %v61
    %701 = vmatpush1.msra.mxu0 %v60
    %702 = vmatprep.subr.mxu0 %v65
    %703 = vmatpush1.msra.mxu0 %v64
    %704 = vmatprep.subr.mxu0 %v69
    %705 = vmatpush1.msra.mxu0 %v68
    %706 = vmatprep.subr.mxu0 %v73
    %707 = vmatpush1.msra.mxu0 %v72
    %708 = vmatprep.subr.mxu0 %v77
    %709 = vmatpush1.msra.mxu0 %v76
    %710 = vmatprep.subr.mxu0 %v81
    %711 = vmatpush1.msra.mxu0 %v80
    %712 = vmatprep.subr.mxu0 %v85
    %713 = vmatpush1.msra.mxu0 %v84
    %714 = vmatprep.subr.mxu0 %v89
    %715 = vmatpush1.msra.mxu0 %v88
    %716 = vmatprep.subr.mxu0 %v93
    %717 = vmatpush1.msra.mxu0 %v92
    %718 = vmatprep.subr.mxu0 %v97
    %719 = vmatpush1.msra.mxu0 %v96
    %720 = vmatprep.subr.mxu0 %v101
    %721 = vmatpush1.msra.mxu0 %v100
    %722 = vmatprep.subr.mxu0 %v105
    %723 = vmatpush1.msra.mxu0 %v104
    %724 = vmatprep.subr.mxu0 %v109
    %725 = vmatpush1.msra.mxu0 %v108
    %726 = vmatprep.subr.mxu0 0.0
    %727 = vmatpush1.msra.mxu0 0.0
    %728 = vmatprep.subr.mxu0 0.0
    %729 = vmatpush1.msra.mxu0 0.0
    %730 = vmatprep.subr.mxu0 0.0
    %731 = vmatpush1.msra.mxu0 0.0
    %732 = vmatprep.subr.mxu0 0.0
    %733 = vmatpush1.msra.mxu0 0.0
    %734 = vmatprep.subr.mxu0 0.0
    %735 = vmatpush1.msra.mxu0 0.0
    %736 = vmatprep.subr.mxu0 0.0
    %737 = vmatpush1.msra.mxu0 0.0
    %738 = vmatprep.subr.mxu0 0.0
    %739 = vmatpush1.msra.mxu0 0.0
    %740 = vmatprep.subr.mxu0 0.0
    %741 = vmatpush1.msra.mxu0 0.0
    %742 = vmatprep.subr.mxu0 0.0
    %743 = vmatpush1.msra.mxu0 0.0
    %744 = vmatprep.subr.mxu0 0.0
    %745 = vmatpush1.msra.mxu0 0.0
    %746 = vmatprep.subr.mxu0 0.0
    %747 = vmatpush1.msra.mxu0 0.0
    %748 = vmatprep.subr.mxu0 0.0
    %749 = vmatpush1.msra.mxu0 0.0
    %750 = vmatprep.subr.mxu0 0.0
    %751 = vmatpush1.msra.mxu0 0.0
    %752 = vmatprep.subr.mxu0 0.0
    %753 = vmatpush1.msra.mxu0 0.0
    %754 = vmatprep.subr.mxu0 0.0
    %755 = vmatpush1.msra.mxu0 0.0
    %756 = vmatprep.subr.mxu0 0.0
    %757 = vmatpush1.msra.mxu0 0.0
    %758 = vmatprep.mubr.f32.mxu0 0.0
    %759 = vmatmul.mubr.f32.gmra.mrb[0].mxu0 %v617
    %v760 = vpop.f32.mrb[0].mxu0
    %v761 = vadd.f32 0.0, %v760
    %v762 = vpop.f32.mrb[0].mxu0
    %v763 = vadd.f32 0.0, %v762
    %764 = vdwg.mxu0
    %v765 = vadd.f32 %v619, %v690
    %v766 = vadd.f32 %v620, %v692
    %v767 = vadd.f32 %v621, %v761
    %v768 = vadd.f32 %v622, %v763
    %v769 = vmul.f32 %v765, 0.5
    %v770 = vtanh.pop %v769
    %v771 = vmul.f32 %v770, 0.5
    %v772 = vadd.f32 %v771, 0.5
    %v773 = vmul.f32 %v766, 0.5
    %v774 = vtanh.pop %v773
    %v775 = vmul.f32 %v774, 0.5
    %v776 = vadd.f32 %v775, 0.5
    %v777 = vtanh.pop %v767
    %v778 = vmul.f32 %v768, 0.5
    %v779 = vtanh.pop %v778
    %v780 = vmul.f32 %v779, 0.5
    %v781 = vadd.f32 %v780, 0.5
    %v782 = vmul.f32 %v776, %v615
    %v783 = vmul.f32 %v772, %v777
    %v784 = vadd.f32 %v782, %v783
    %v785 = vtanh.pop %v784
    %v786 = vmul.f32 %v781, %v785
    %s787 = scalar_lea.vmem [#allocation4], 128
    %v788 = vld [vmem:[%s787] sm:$0xff]
    %v789 = vld [vmem:[%s787 + $0x8] sm:$0xff]
    %v790 = vld [vmem:[%s787 + $0x10] sm:$0xff]
    %v791 = vld [vmem:[%s787 + $0x18] sm:$0xff]
    %792 = vmatprep.subr.mxu0 %v47
    %793 = vmatpush1.msra.mxu0 %v46
    %794 = vmatprep.subr.mxu0 %v51
    %795 = vmatpush1.msra.mxu0 %v50
    %796 = vmatprep.subr.mxu0 %v55
    %797 = vmatpush1.msra.mxu0 %v54
    %798 = vmatprep.subr.mxu0 %v59
    %799 = vmatpush1.msra.mxu0 %v58
    %800 = vmatprep.subr.mxu0 %v63
    %801 = vmatpush1.msra.mxu0 %v62
    %802 = vmatprep.subr.mxu0 %v67
    %803 = vmatpush1.msra.mxu0 %v66
    %804 = vmatprep.subr.mxu0 %v71
    %805 = vmatpush1.msra.mxu0 %v70
    %806 = vmatprep.subr.mxu0 %v75
    %807 = vmatpush1.msra.mxu0 %v74
    %808 = vmatprep.subr.mxu0 %v79
    %809 = vmatpush1.msra.mxu0 %v78
    %810 = vmatprep.subr.mxu0 %v83
    %811 = vmatpush1.msra.mxu0 %v82
    %812 = vmatprep.subr.mxu0 %v87
    %813 = vmatpush1.msra.mxu0 %v86
    %814 = vmatprep.subr.mxu0 %v91
    %815 = vmatpush1.msra.mxu0 %v90
    %816 = vmatprep.subr.mxu0 %v95
    %817 = vmatpush1.msra.mxu0 %v94
    %818 = vmatprep.subr.mxu0 %v99
    %819 = vmatpush1.msra.mxu0 %v98
    %820 = vmatprep.subr.mxu0 %v103
    %821 = vmatpush1.msra.mxu0 %v102
    %822 = vmatprep.subr.mxu0 %v107
    %823 = vmatpush1.msra.mxu0 %v106
    %824 = vmatprep.subr.mxu0 0.0
    %825 = vmatpush1.msra.mxu0 0.0
    %826 = vmatprep.subr.mxu0 0.0
    %827 = vmatpush1.msra.mxu0 0.0
    %828 = vmatprep.subr.mxu0 0.0
    %829 = vmatpush1.msra.mxu0 0.0
    %830 = vmatprep.subr.mxu0 0.0
    %831 = vmatpush1.msra.mxu0 0.0
    %832 = vmatprep.subr.mxu0 0.0
    %833 = vmatpush1.msra.mxu0 0.0
    %834 = vmatprep.subr.mxu0 0.0
    %835 = vmatpush1.msra.mxu0 0.0
    %836 = vmatprep.subr.mxu0 0.0
    %837 = vmatpush1.msra.mxu0 0.0
    %838 = vmatprep.subr.mxu0 0.0
    %839 = vmatpush1.msra.mxu0 0.0
    %840 = vmatprep.subr.mxu0 0.0
    %841 = vmatpush1.msra.mxu0 0.0
    %842 = vmatprep.subr.mxu0 0.0
    %843 = vmatpush1.msra.mxu0 0.0
    %844 = vmatprep.subr.mxu0 0.0
    %845 = vmatpush1.msra.mxu0 0.0
    %846 = vmatprep.subr.mxu0 0.0
    %847 = vmatpush1.msra.mxu0 0.0
    %848 = vmatprep.subr.mxu0 0.0
    %849 = vmatpush1.msra.mxu0 0.0
    %850 = vmatprep.subr.mxu0 0.0
    %851 = vmatpush1.msra.mxu0 0.0
    %852 = vmatprep.subr.mxu0 0.0
    %853 = vmatpush1.msra.mxu0 0.0
    %854 = vmatprep.subr.mxu0 0.0
    %855 = vmatpush1.msra.mxu0 0.0
    %856 = vmatprep.mubr.f32.mxu0 0.0
    %857 = vmatmul.mubr.f32.gmra.mrb[0].mxu0 %v786
    %v858 = vpop.f32.mrb[0].mxu0
    %v859 = vadd.f32 0.0, %v858
    %v860 = vpop.f32.mrb[0].mxu0
    %v861 = vadd.f32 0.0, %v860
    %862 = vdwg.mxu0
    %863 = vmatprep.subr.mxu0 %v49
    %864 = vmatpush1.msra.mxu0 %v48
    %865 = vmatprep.subr.mxu0 %v53
    %866 = vmatpush1.msra.mxu0 %v52
    %867 = vmatprep.subr.mxu0 %v57
    %868 = vmatpush1.msra.mxu0 %v56
    %869 = vmatprep.subr.mxu0 %v61
    %870 = vmatpush1.msra.mxu0 %v60
    %871 = vmatprep.subr.mxu0 %v65
    %872 = vmatpush1.msra.mxu0 %v64
    %873 = vmatprep.subr.mxu0 %v69
    %874 = vmatpush1.msra.mxu0 %v68
    %875 = vmatprep.subr.mxu0 %v73
    %876 = vmatpush1.msra.mxu0 %v72
    %877 = vmatprep.subr.mxu0 %v77
    %878 = vmatpush1.msra.mxu0 %v76
    %879 = vmatprep.subr.mxu0 %v81
    %880 = vmatpush1.msra.mxu0 %v80
    %881 = vmatprep.subr.mxu0 %v85
    %882 = vmatpush1.msra.mxu0 %v84
    %883 = vmatprep.subr.mxu0 %v89
    %884 = vmatpush1.msra.mxu0 %v88
    %885 = vmatprep.subr.mxu0 %v93
    %886 = vmatpush1.msra.mxu0 %v92
    %887 = vmatprep.subr.mxu0 %v97
    %888 = vmatpush1.msra.mxu0 %v96
    %889 = vmatprep.subr.mxu0 %v101
    %890 = vmatpush1.msra.mxu0 %v100
    %891 = vmatprep.subr.mxu0 %v105
    %892 = vmatpush1.msra.mxu0 %v104
    %893 = vmatprep.subr.mxu0 %v109
    %894 = vmatpush1.msra.mxu0 %v108
    %895 = vmatprep.subr.mxu0 0.0
    %896 = vmatpush1.msra.mxu0 0.0
    %897 = vmatprep.subr.mxu0 0.0
    %898 = vmatpush1.msra.mxu0 0.0
    %899 = vmatprep.subr.mxu0 0.0
    %900 = vmatpush1.msra.mxu0 0.0
    %901 = vmatprep.subr.mxu0 0.0
    %902 = vmatpush1.msra.mxu0 0.0
    %903 = vmatprep.subr.mxu0 0.0
    %904 = vmatpush1.msra.mxu0 0.0
    %905 = vmatprep.subr.mxu0 0.0
    %906 = vmatpush1.msra.mxu0 0.0
    %907 = vmatprep.subr.mxu0 0.0
    %908 = vmatpush1.msra.mxu0 0.0
    %909 = vmatprep.subr.mxu0 0.0
    %910 = vmatpush1.msra.mxu0 0.0
    %911 = vmatprep.subr.mxu0 0.0
    %912 = vmatpush1.msra.mxu0 0.0
    %913 = vmatprep.subr.mxu0 0.0
    %914 = vmatpush1.msra.mxu0 0.0
    %915 = vmatprep.subr.mxu0 0.0
    %916 = vmatpush1.msra.mxu0 0.0
    %917 = vmatprep.subr.mxu0 0.0
    %918 = vmatpush1.msra.mxu0 0.0
    %919 = vmatprep.subr.mxu0 0.0
    %920 = vmatpush1.msra.mxu0 0.0
    %921 = vmatprep.subr.mxu0 0.0
    %922 = vmatpush1.msra.mxu0 0.0
    %923 = vmatprep.subr.mxu0 0.0
    %924 = vmatpush1.msra.mxu0 0.0
    %925 = vmatprep.subr.mxu0 0.0
    %926 = vmatpush1.msra.mxu0 0.0
    %927 = vmatprep.mubr.f32.mxu0 0.0
    %928 = vmatmul.mubr.f32.gmra.mrb[0].mxu0 %v786
    %v929 = vpop.f32.mrb[0].mxu0
    %v930 = vadd.f32 0.0, %v929
    %v931 = vpop.f32.mrb[0].mxu0
    %v932 = vadd.f32 0.0, %v931
    %933 = vdwg.mxu0
    %v934 = vadd.f32 %v788, %v859
    %v935 = vadd.f32 %v789, %v861
    %v936 = vadd.f32 %v790, %v930
    %v937 = vadd.f32 %v791, %v932
    %v938 = vmul.f32 %v934, 0.5
    %v939 = vtanh.pop %v938
    %v940 = vmul.f32 %v939, 0.5
    %v941 = vadd.f32 %v940, 0.5
    %v942 = vmul.f32 %v935, 0.5
    %v943 = vtanh.pop %v942
    %v944 = vmul.f32 %v943, 0.5
    %v945 = vadd.f32 %v944, 0.5
    %v946 = vtanh.pop %v936
    %v947 = vmul.f32 %v937, 0.5
    %v948 = vtanh.pop %v947
    %v949 = vmul.f32 %v948, 0.5
    %v950 = vadd.f32 %v949, 0.5
    %v951 = vmul.f32 %v945, %v784
    %v952 = vmul.f32 %v941, %v946
    %v953 = vadd.f32 %v951, %v952
    %v954 = vtanh.pop %v953
    %v955 = vmul.f32 %v950, %v954
    %s956 = scalar_lea.vmem [#allocation4], 160
    %v957 = vld [vmem:[%s956] sm:$0xff]
    %v958 = vld [vmem:[%s956 + $0x8] sm:$0xff]
    %v959 = vld [vmem:[%s956 + $0x10] sm:$0xff]
    %v960 = vld [vmem:[%s956 + $0x18] sm:$0xff]
    %961 = vmatprep.subr.mxu0 %v47
    %962 = vmatpush1.msra.mxu0 %v46
    %963 = vmatprep.subr.mxu0 %v51
    %964 = vmatpush1.msra.mxu0 %v50
    %965 = vmatprep.subr.mxu0 %v55
    %966 = vmatpush1.msra.mxu0 %v54
    %967 = vmatprep.subr.mxu0 %v59
    %968 = vmatpush1.msra.mxu0 %v58
    %969 = vmatprep.subr.mxu0 %v63
    %970 = vmatpush1.msra.mxu0 %v62
    %971 = vmatprep.subr.mxu0 %v67
    %972 = vmatpush1.msra.mxu0 %v66
    %973 = vmatprep.subr.mxu0 %v71
    %974 = vmatpush1.msra.mxu0 %v70
    %975 = vmatprep.subr.mxu0 %v75
    %976 = vmatpush1.msra.mxu0 %v74
    %977 = vmatprep.subr.mxu0 %v79
    %978 = vmatpush1.msra.mxu0 %v78
    %979 = vmatprep.subr.mxu0 %v83
    %980 = vmatpush1.msra.mxu0 %v82
    %981 = vmatprep.subr.mxu0 %v87
    %982 = vmatpush1.msra.mxu0 %v86
    %983 = vmatprep.subr.mxu0 %v91
    %984 = vmatpush1.msra.mxu0 %v90
    %985 = vmatprep.subr.mxu0 %v95
    %986 = vmatpush1.msra.mxu0 %v94
    %987 = vmatprep.subr.mxu0 %v99
    %988 = vmatpush1.msra.mxu0 %v98
    %989 = vmatprep.subr.mxu0 %v103
    %990 = vmatpush1.msra.mxu0 %v102
    %991 = vmatprep.subr.mxu0 %v107
    %992 = vmatpush1.msra.mxu0 %v106
    %993 = vmatprep.subr.mxu0 0.0
    %994 = vmatpush1.msra.mxu0 0.0
    %995 = vmatprep.subr.mxu0 0.0
    %996 = vmatpush1.msra.mxu0 0.0
    %997 = vmatprep.subr.mxu0 0.0
    %998 = vmatpush1.msra.mxu0 0.0
    %999 = vmatprep.subr.mxu0 0.0
    %1000 = vmatpush1.msra.mxu0 0.0
    %1001 = vmatprep.subr.mxu0 0.0
    %1002 = vmatpush1.msra.mxu0 0.0
    %1003 = vmatprep.subr.mxu0 0.0
    %1004 = vmatpush1.msra.mxu0 0.0
    %1005 = vmatprep.subr.mxu0 0.0
    %1006 = vmatpush1.msra.mxu0 0.0
    %1007 = vmatprep.subr.mxu0 0.0
    %1008 = vmatpush1.msra.mxu0 0.0
    %1009 = vmatprep.subr.mxu0 0.0
    %1010 = vmatpush1.msra.mxu0 0.0
    %1011 = vmatprep.subr.mxu0 0.0
    %1012 = vmatpush1.msra.mxu0 0.0
    %1013 = vmatprep.subr.mxu0 0.0
    %1014 = vmatpush1.msra.mxu0 0.0
    %1015 = vmatprep.subr.mxu0 0.0
    %1016 = vmatpush1.msra.mxu0 0.0
    %1017 = vmatprep.subr.mxu0 0.0
    %1018 = vmatpush1.msra.mxu0 0.0
    %1019 = vmatprep.subr.mxu0 0.0
    %1020 = vmatpush1.msra.mxu0 0.0
    %1021 = vmatprep.subr.mxu0 0.0
    %1022 = vmatpush1.msra.mxu0 0.0
    %1023 = vmatprep.subr.mxu0 0.0
    %1024 = vmatpush1.msra.mxu0 0.0
    %1025 = vmatprep.mubr.f32.mxu0 0.0
    %1026 = vmatmul.mubr.f32.gmra.mrb[0].mxu0 %v955
    %v1027 = vpop.f32.mrb[0].mxu0
    %v1028 = vadd.f32 0.0, %v1027
    %v1029 = vpop.f32.mrb[0].mxu0
    %v1030 = vadd.f32 0.0, %v1029
    %1031 = vdwg.mxu0
    %1032 = vmatprep.subr.mxu0 %v49
    %1033 = vmatpush1.msra.mxu0 %v48
    %1034 = vmatprep.subr.mxu0 %v53
    %1035 = vmatpush1.msra.mxu0 %v52
    %1036 = vmatprep.subr.mxu0 %v57
    %1037 = vmatpush1.msra.mxu0 %v56
    %1038 = vmatprep.subr.mxu0 %v61
    %1039 = vmatpush1.msra.mxu0 %v60
    %1040 = vmatprep.subr.mxu0 %v65
    %1041 = vmatpush1.msra.mxu0 %v64
    %1042 = vmatprep.subr.mxu0 %v69
    %1043 = vmatpush1.msra.mxu0 %v68
    %1044 = vmatprep.subr.mxu0 %v73
    %1045 = vmatpush1.msra.mxu0 %v72
    %1046 = vmatprep.subr.mxu0 %v77
    %1047 = vmatpush1.msra.mxu0 %v76
    %1048 = vmatprep.subr.mxu0 %v81
    %1049 = vmatpush1.msra.mxu0 %v80
    %1050 = vmatprep.subr.mxu0 %v85
    %1051 = vmatpush1.msra.mxu0 %v84
    %1052 = vmatprep.subr.mxu0 %v89
    %1053 = vmatpush1.msra.mxu0 %v88
    %1054 = vmatprep.subr.mxu0 %v93
    %1055 = vmatpush1.msra.mxu0 %v92
    %1056 = vmatprep.subr.mxu0 %v97
    %1057 = vmatpush1.msra.mxu0 %v96
    %1058 = vmatprep.subr.mxu0 %v101
    %1059 = vmatpush1.msra.mxu0 %v100
    %1060 = vmatprep.subr.mxu0 %v105
    %1061 = vmatpush1.msra.mxu0 %v104
    %1062 = vmatprep.subr.mxu0 %v109
    %1063 = vmatpush1.msra.mxu0 %v108
    %1064 = vmatprep.subr.mxu0 0.0
    %1065 = vmatpush1.msra.mxu0 0.0
    %1066 = vmatprep.subr.mxu0 0.0
    %1067 = vmatpush1.msra.mxu0 0.0
    %1068 = vmatprep.subr.mxu0 0.0
    %1069 = vmatpush1.msra.mxu0 0.0
    %1070 = vmatprep.subr.mxu0 0.0
    %1071 = vmatpush1.msra.mxu0 0.0
    %1072 = vmatprep.subr.mxu0 0.0
    %1073 = vmatpush1.msra.mxu0 0.0
    %1074 = vmatprep.subr.mxu0 0.0
    %1075 = vmatpush1.msra.mxu0 0.0
    %1076 = vmatprep.subr.mxu0 0.0
    %1077 = vmatpush1.msra.mxu0 0.0
    %1078 = vmatprep.subr.mxu0 0.0
    %1079 = vmatpush1.msra.mxu0 0.0
    %1080 = vmatprep.subr.mxu0 0.0
    %1081 = vmatpush1.msra.mxu0 0.0
    %1082 = vmatprep.subr.mxu0 0.0
    %1083 = vmatpush1.msra.mxu0 0.0
    %1084 = vmatprep.subr.mxu0 0.0
    %1085 = vmatpush1.msra.mxu0 0.0
    %1086 = vmatprep.subr.mxu0 0.0
    %1087 = vmatpush1.msra.mxu0 0.0
    %1088 = vmatprep.subr.mxu0 0.0
    %1089 = vmatpush1.msra.mxu0 0.0
    %1090 = vmatprep.subr.mxu0 0.0
    %1091 = vmatpush1.msra.mxu0 0.0
    %1092 = vmatprep.subr.mxu0 0.0
    %1093 = vmatpush1.msra.mxu0 0.0
    %1094 = vmatprep.subr.mxu0 0.0
    %1095 = vmatpush1.msra.mxu0 0.0
    %1096 = vmatprep.mubr.f32.mxu0 0.0
    %1097 = vmatmul.mubr.f32.gmra.mrb[0].mxu0 %v955
    %v1098 = vpop.f32.mrb[0].mxu0
    %v1099 = vadd.f32 0.0, %v1098
    %v1100 = vpop.f32.mrb[0].mxu0
    %v1101 = vadd.f32 0.0, %v1100
    %1102 = vdwg.mxu0
    %v1103 = vadd.f32 %v957, %v1028
    %v1104 = vadd.f32 %v958, %v1030
    %v1105 = vadd.f32 %v959, %v1099
    %v1106 = vadd.f32 %v960, %v1101
    %v1107 = vmul.f32 %v1103, 0.5
    %v1108 = vtanh.pop %v1107
    %v1109 = vmul.f32 %v1108, 0.5
    %v1110 = vadd.f32 %v1109, 0.5
    %v1111 = vmul.f32 %v1104, 0.5
    %v1112 = vtanh.pop %v1111
    %v1113 = vmul.f32 %v1112, 0.5
    %v1114 = vadd.f32 %v1113, 0.5
    %v1115 = vtanh.pop %v1105
    %v1116 = vmul.f32 %v1106, 0.5
    %v1117 = vtanh.pop %v1116
    %v1118 = vmul.f32 %v1117, 0.5
    %v1119 = vadd.f32 %v1118, 0.5
    %v1120 = vmul.f32 %v1114, %v953
    %v1121 = vmul.f32 %v1110, %v1115
    %v1122 = vadd.f32 %v1120, %v1121
    %v1123 = vtanh.pop %v1122
    %v1124 = vmul.f32 %v1119, %v1123
    %s1125 = scalar_lea.vmem [#allocation4], 192
    %v1126 = vld [vmem:[%s1125] sm:$0xff]
    %v1127 = vld [vmem:[%s1125 + $0x8] sm:$0xff]
    %v1128 = vld [vmem:[%s1125 + $0x10] sm:$0xff]
    %v1129 = vld [vmem:[%s1125 + $0x18] sm:$0xff]
    %1130 = vmatprep.subr.mxu0 %v47
    %1131 = vmatpush1.msra.mxu0 %v46
    %1132 = vmatprep.subr.mxu0 %v51
    %1133 = vmatpush1.msra.mxu0 %v50
    %1134 = vmatprep.subr.mxu0 %v55
    %1135 = vmatpush1.msra.mxu0 %v54
    %1136 = vmatprep.subr.mxu0 %v59
    %1137 = vmatpush1.msra.mxu0 %v58
    %1138 = vmatprep.subr.mxu0 %v63
    %1139 = vmatpush1.msra.mxu0 %v62
    %1140 = vmatprep.subr.mxu0 %v67
    %1141 = vmatpush1.msra.mxu0 %v66
    %1142 = vmatprep.subr.mxu0 %v71
    %1143 = vmatpush1.msra.mxu0 %v70
    %1144 = vmatprep.subr.mxu0 %v75
    %1145 = vmatpush1.msra.mxu0 %v74
    %1146 = vmatprep.subr.mxu0 %v79
    %1147 = vmatpush1.msra.mxu0 %v78
    %1148 = vmatprep.subr.mxu0 %v83
    %1149 = vmatpush1.msra.mxu0 %v82
    %1150 = vmatprep.subr.mxu0 %v87
    %1151 = vmatpush1.msra.mxu0 %v86
    %1152 = vmatprep.subr.mxu0 %v91
    %1153 = vmatpush1.msra.mxu0 %v90
    %1154 = vmatprep.subr.mxu0 %v95
    %1155 = vmatpush1.msra.mxu0 %v94
    %1156 = vmatprep.subr.mxu0 %v99
    %1157 = vmatpush1.msra.mxu0 %v98
    %1158 = vmatprep.subr.mxu0 %v103
    %1159 = vmatpush1.msra.mxu0 %v102
    %1160 = vmatprep.subr.mxu0 %v107
    %1161 = vmatpush1.msra.mxu0 %v106
    %1162 = vmatprep.subr.mxu0 0.0
    %1163 = vmatpush1.msra.mxu0 0.0
    %1164 = vmatprep.subr.mxu0 0.0
    %1165 = vmatpush1.msra.mxu0 0.0
    %1166 = vmatprep.subr.mxu0 0.0
    %1167 = vmatpush1.msra.mxu0 0.0
    %1168 = vmatprep.subr.mxu0 0.0
    %1169 = vmatpush1.msra.mxu0 0.0
    %1170 = vmatprep.subr.mxu0 0.0
    %1171 = vmatpush1.msra.mxu0 0.0
    %1172 = vmatprep.subr.mxu0 0.0
    %1173 = vmatpush1.msra.mxu0 0.0
    %1174 = vmatprep.subr.mxu0 0.0
    %1175 = vmatpush1.msra.mxu0 0.0
    %1176 = vmatprep.subr.mxu0 0.0
    %1177 = vmatpush1.msra.mxu0 0.0
    %1178 = vmatprep.subr.mxu0 0.0
    %1179 = vmatpush1.msra.mxu0 0.0
    %1180 = vmatprep.subr.mxu0 0.0
    %1181 = vmatpush1.msra.mxu0 0.0
    %1182 = vmatprep.subr.mxu0 0.0
    %1183 = vmatpush1.msra.mxu0 0.0
    %1184 = vmatprep.subr.mxu0 0.0
    %1185 = vmatpush1.msra.mxu0 0.0
    %1186 = vmatprep.subr.mxu0 0.0
    %1187 = vmatpush1.msra.mxu0 0.0
    %1188 = vmatprep.subr.mxu0 0.0
    %1189 = vmatpush1.msra.mxu0 0.0
    %1190 = vmatprep.subr.mxu0 0.0
    %1191 = vmatpush1.msra.mxu0 0.0
    %1192 = vmatprep.subr.mxu0 0.0
    %1193 = vmatpush1.msra.mxu0 0.0
    %1194 = vmatprep.mubr.f32.mxu0 0.0
    %1195 = vmatmul.mubr.f32.gmra.mrb[0].mxu0 %v1124
    %v1196 = vpop.f32.mrb[0].mxu0
    %v1197 = vadd.f32 0.0, %v1196
    %v1198 = vpop.f32.mrb[0].mxu0
    %v1199 = vadd.f32 0.0, %v1198
    %1200 = vdwg.mxu0
    %1201 = vmatprep.subr.mxu0 %v49
    %1202 = vmatpush1.msra.mxu0 %v48
    %1203 = vmatprep.subr.mxu0 %v53
    %1204 = vmatpush1.msra.mxu0 %v52
    %1205 = vmatprep.subr.mxu0 %v57
    %1206 = vmatpush1.msra.mxu0 %v56
    %1207 = vmatprep.subr.mxu0 %v61
    %1208 = vmatpush1.msra.mxu0 %v60
    %1209 = vmatprep.subr.mxu0 %v65
    %1210 = vmatpush1.msra.mxu0 %v64
    %1211 = vmatprep.subr.mxu0 %v69
    %1212 = vmatpush1.msra.mxu0 %v68
    %1213 = vmatprep.subr.mxu0 %v73
    %1214 = vmatpush1.msra.mxu0 %v72
    %1215 = vmatprep.subr.mxu0 %v77
    %1216 = vmatpush1.msra.mxu0 %v76
    %1217 = vmatprep.subr.mxu0 %v81
    %1218 = vmatpush1.msra.mxu0 %v80
    %1219 = vmatprep.subr.mxu0 %v85
    %1220 = vmatpush1.msra.mxu0 %v84
    %1221 = vmatprep.subr.mxu0 %v89
    %1222 = vmatpush1.msra.mxu0 %v88
    %1223 = vmatprep.subr.mxu0 %v93
    %1224 = vmatpush1.msra.mxu0 %v92
    %1225 = vmatprep.subr.mxu0 %v97
    %1226 = vmatpush1.msra.mxu0 %v96
    %1227 = vmatprep.subr.mxu0 %v101
    %1228 = vmatpush1.msra.mxu0 %v100
    %1229 = vmatprep.subr.mxu0 %v105
    %1230 = vmatpush1.msra.mxu0 %v104
    %1231 = vmatprep.subr.mxu0 %v109
    %1232 = vmatpush1.msra.mxu0 %v108
    %1233 = vmatprep.subr.mxu0 0.0
    %1234 = vmatpush1.msra.mxu0 0.0
    %1235 = vmatprep.subr.mxu0 0.0
    %1236 = vmatpush1.msra.mxu0 0.0
    %1237 = vmatprep.subr.mxu0 0.0
    %1238 = vmatpush1.msra.mxu0 0.0
    %1239 = vmatprep.subr.mxu0 0.0
    %1240 = vmatpush1.msra.mxu0 0.0
    %1241 = vmatprep.subr.mxu0 0.0
    %1242 = vmatpush1.msra.mxu0 0.0
    %1243 = vmatprep.subr.mxu0 0.0
    %1244 = vmatpush1.msra.mxu0 0.0
    %1245 = vmatprep.subr.mxu0 0.0
    %1246 = vmatpush1.msra.mxu0 0.0
    %1247 = vmatprep.subr.mxu0 0.0
    %1248 = vmatpush1.msra.mxu0 0.0
    %1249 = vmatprep.subr.mxu0 0.0
    %1250 = vmatpush1.msra.mxu0 0.0
    %1251 = vmatprep.subr.mxu0 0.0
    %1252 = vmatpush1.msra.mxu0 0.0
    %1253 = vmatprep.subr.mxu0 0.0
    %1254 = vmatpush1.msra.mxu0 0.0
    %1255 = vmatprep.subr.mxu0 0.0
    %1256 = vmatpush1.msra.mxu0 0.0
    %1257 = vmatprep.subr.mxu0 0.0
    %1258 = vmatpush1.msra.mxu0 0.0
    %1259 = vmatprep.subr.mxu0 0.0
    %1260 = vmatpush1.msra.mxu0 0.0
    %1261 = vmatprep.subr.mxu0 0.0
    %1262 = vmatpush1.msra.mxu0 0.0
    %1263 = vmatprep.subr.mxu0 0.0
    %1264 = vmatpush1.msra.mxu0 0.0
    %1265 = vmatprep.mubr.f32.mxu0 0.0
    %1266 = vmatmul.mubr.f32.gmra.mrb[0].mxu0 %v1124
    %v1267 = vpop.f32.mrb[0].mxu0
    %v1268 = vadd.f32 0.0, %v1267
    %v1269 = vpop.f32.mrb[0].mxu0
    %v1270 = vadd.f32 0.0, %v1269
    %1271 = vdwg.mxu0
    %v1272 = vadd.f32 %v1126, %v1197
    %v1273 = vadd.f32 %v1127, %v1199
    %v1274 = vadd.f32 %v1128, %v1268
    %v1275 = vadd.f32 %v1129, %v1270
    %v1276 = vmul.f32 %v1272, 0.5
    %v1277 = vtanh.pop %v1276
    %v1278 = vmul.f32 %v1277, 0.5
    %v1279 = vadd.f32 %v1278, 0.5
    %v1280 = vmul.f32 %v1273, 0.5
    %v1281 = vtanh.pop %v1280
    %v1282 = vmul.f32 %v1281, 0.5
    %v1283 = vadd.f32 %v1282, 0.5
    %v1284 = vtanh.pop %v1274
    %v1285 = vmul.f32 %v1275, 0.5
    %v1286 = vtanh.pop %v1285
    %v1287 = vmul.f32 %v1286, 0.5
    %v1288 = vadd.f32 %v1287, 0.5
    %v1289 = vmul.f32 %v1283, %v1122
    %v1290 = vmul.f32 %v1279, %v1284
    %v1291 = vadd.f32 %v1289, %v1290
    %v1292 = vtanh.pop %v1291
    %v1293 = vmul.f32 %v1288, %v1292
    %s1294 = scalar_lea.vmem [#allocation4], 224
    %v1295 = vld [vmem:[%s1294] sm:$0xff]
    %v1296 = vld [vmem:[%s1294 + $0x8] sm:$0xff]
    %v1297 = vld [vmem:[%s1294 + $0x10] sm:$0xff]
    %v1298 = vld [vmem:[%s1294 + $0x18] sm:$0xff]
    %1299 = vmatprep.subr.mxu0 %v47
    %1300 = vmatpush1.msra.mxu0 %v46
    %1301 = vmatprep.subr.mxu0 %v51
    %1302 = vmatpush1.msra.mxu0 %v50
    %1303 = vmatprep.subr.mxu0 %v55
    %1304 = vmatpush1.msra.mxu0 %v54
    %1305 = vmatprep.subr.mxu0 %v59
    %1306 = vmatpush1.msra.mxu0 %v58
    %1307 = vmatprep.subr.mxu0 %v63
    %1308 = vmatpush1.msra.mxu0 %v62
    %1309 = vmatprep.subr.mxu0 %v67
    %1310 = vmatpush1.msra.mxu0 %v66
    %1311 = vmatprep.subr.mxu0 %v71
    %1312 = vmatpush1.msra.mxu0 %v70
    %1313 = vmatprep.subr.mxu0 %v75
    %1314 = vmatpush1.msra.mxu0 %v74
    %1315 = vmatprep.subr.mxu0 %v79
    %1316 = vmatpush1.msra.mxu0 %v78
    %1317 = vmatprep.subr.mxu0 %v83
    %1318 = vmatpush1.msra.mxu0 %v82
    %1319 = vmatprep.subr.mxu0 %v87
    %1320 = vmatpush1.msra.mxu0 %v86
    %1321 = vmatprep.subr.mxu0 %v91
    %1322 = vmatpush1.msra.mxu0 %v90
    %1323 = vmatprep.subr.mxu0 %v95
    %1324 = vmatpush1.msra.mxu0 %v94
    %1325 = vmatprep.subr.mxu0 %v99
    %1326 = vmatpush1.msra.mxu0 %v98
    %1327 = vmatprep.subr.mxu0 %v103
    %1328 = vmatpush1.msra.mxu0 %v102
    %1329 = vmatprep.subr.mxu0 %v107
    %1330 = vmatpush1.msra.mxu0 %v106
    %1331 = vmatprep.subr.mxu0 0.0
    %1332 = vmatpush1.msra.mxu0 0.0
    %1333 = vmatprep.subr.mxu0 0.0
    %1334 = vmatpush1.msra.mxu0 0.0
    %1335 = vmatprep.subr.mxu0 0.0
    %1336 = vmatpush1.msra.mxu0 0.0
    %1337 = vmatprep.subr.mxu0 0.0
    %1338 = vmatpush1.msra.mxu0 0.0
    %1339 = vmatprep.subr.mxu0 0.0
    %1340 = vmatpush1.msra.mxu0 0.0
    %1341 = vmatprep.subr.mxu0 0.0
    %1342 = vmatpush1.msra.mxu0 0.0
    %1343 = vmatprep.subr.mxu0 0.0
    %1344 = vmatpush1.msra.mxu0 0.0
    %1345 = vmatprep.subr.mxu0 0.0
    %1346 = vmatpush1.msra.mxu0 0.0
    %1347 = vmatprep.subr.mxu0 0.0
    %1348 = vmatpush1.msra.mxu0 0.0
    %1349 = vmatprep.subr.mxu0 0.0
    %1350 = vmatpush1.msra.mxu0 0.0
    %1351 = vmatprep.subr.mxu0 0.0
    %1352 = vmatpush1.msra.mxu0 0.0
    %1353 = vmatprep.subr.mxu0 0.0
    %1354 = vmatpush1.msra.mxu0 0.0
    %1355 = vmatprep.subr.mxu0 0.0
    %1356 = vmatpush1.msra.mxu0 0.0
    %1357 = vmatprep.subr.mxu0 0.0
    %1358 = vmatpush1.msra.mxu0 0.0
    %1359 = vmatprep.subr.mxu0 0.0
    %1360 = vmatpush1.msra.mxu0 0.0
    %1361 = vmatprep.subr.mxu0 0.0
    %1362 = vmatpush1.msra.mxu0 0.0
    %1363 = vmatprep.mubr.f32.mxu0 0.0
    %1364 = vmatmul.mubr.f32.gmra.mrb[0].mxu0 %v1293
    %v1365 = vpop.f32.mrb[0].mxu0
    %v1366 = vadd.f32 0.0, %v1365
    %v1367 = vpop.f32.mrb[0].mxu0
    %v1368 = vadd.f32 0.0, %v1367
    %1369 = vdwg.mxu0
    %1370 = vmatprep.subr.mxu0 %v49
    %1371 = vmatpush1.msra.mxu0 %v48
    %1372 = vmatprep.subr.mxu0 %v53
    %1373 = vmatpush1.msra.mxu0 %v52
    %1374 = vmatprep.subr.mxu0 %v57
    %1375 = vmatpush1.msra.mxu0 %v56
    %1376 = vmatprep.subr.mxu0 %v61
    %1377 = vmatpush1.msra.mxu0 %v60
    %1378 = vmatprep.subr.mxu0 %v65
    %1379 = vmatpush1.msra.mxu0 %v64
    %1380 = vmatprep.subr.mxu0 %v69
    %1381 = vmatpush1.msra.mxu0 %v68
    %1382 = vmatprep.subr.mxu0 %v73
    %1383 = vmatpush1.msra.mxu0 %v72
    %1384 = vmatprep.subr.mxu0 %v77
    %1385 = vmatpush1.msra.mxu0 %v76
    %1386 = vmatprep.subr.mxu0 %v81
    %1387 = vmatpush1.msra.mxu0 %v80
    %1388 = vmatprep.subr.mxu0 %v85
    %1389 = vmatpush1.msra.mxu0 %v84
    %1390 = vmatprep.subr.mxu0 %v89
    %1391 = vmatpush1.msra.mxu0 %v88
    %1392 = vmatprep.subr.mxu0 %v93
    %1393 = vmatpush1.msra.mxu0 %v92
    %1394 = vmatprep.subr.mxu0 %v97
    %1395 = vmatpush1.msra.mxu0 %v96
    %1396 = vmatprep.subr.mxu0 %v101
    %1397 = vmatpush1.msra.mxu0 %v100
    %1398 = vmatprep.subr.mxu0 %v105
    %1399 = vmatpush1.msra.mxu0 %v104
    %1400 = vmatprep.subr.mxu0 %v109
    %1401 = vmatpush1.msra.mxu0 %v108
    %1402 = vmatprep.subr.mxu0 0.0
    %1403 = vmatpush1.msra.mxu0 0.0
    %1404 = vmatprep.subr.mxu0 0.0
    %1405 = vmatpush1.msra.mxu0 0.0
    %1406 = vmatprep.subr.mxu0 0.0
    %1407 = vmatpush1.msra.mxu0 0.0
    %1408 = vmatprep.subr.mxu0 0.0
    %1409 = vmatpush1.msra.mxu0 0.0
    %1410 = vmatprep.subr.mxu0 0.0
    %1411 = vmatpush1.msra.mxu0 0.0
    %1412 = vmatprep.subr.mxu0 0.0
    %1413 = vmatpush1.msra.mxu0 0.0
    %1414 = vmatprep.subr.mxu0 0.0
    %1415 = vmatpush1.msra.mxu0 0.0
    %1416 = vmatprep.subr.mxu0 0.0
    %1417 = vmatpush1.msra.mxu0 0.0
    %1418 = vmatprep.subr.mxu0 0.0
    %1419 = vmatpush1.msra.mxu0 0.0
    %1420 = vmatprep.subr.mxu0 0.0
    %1421 = vmatpush1.msra.mxu0 0.0
    %1422 = vmatprep.subr.mxu0 0.0
    %1423 = vmatpush1.msra.mxu0 0.0
    %1424 = vmatprep.subr.mxu0 0.0
    %1425 = vmatpush1.msra.mxu0 0.0
    %1426 = vmatprep.subr.mxu0 0.0
    %1427 = vmatpush1.msra.mxu0 0.0
    %1428 = vmatprep.subr.mxu0 0.0
    %1429 = vmatpush1.msra.mxu0 0.0
    %1430 = vmatprep.subr.mxu0 0.0
    %1431 = vmatpush1.msra.mxu0 0.0
    %1432 = vmatprep.subr.mxu0 0.0
    %1433 = vmatpush1.msra.mxu0 0.0
    %1434 = vmatprep.mubr.f32.mxu0 0.0
    %1435 = vmatmul.mubr.f32.gmra.mrb[0].mxu0 %v1293
    %v1436 = vpop.f32.mrb[0].mxu0
    %v1437 = vadd.f32 0.0, %v1436
    %v1438 = vpop.f32.mrb[0].mxu0
    %v1439 = vadd.f32 0.0, %v1438
    %1440 = vdwg.mxu0
    %v1441 = vadd.f32 %v1295, %v1366
    %v1442 = vadd.f32 %v1296, %v1368
    %v1443 = vadd.f32 %v1297, %v1437
    %v1444 = vadd.f32 %v1298, %v1439
    %v1445 = vmul.f32 %v1441, 0.5
    %v1446 = vtanh.pop %v1445
    %v1447 = vmul.f32 %v1446, 0.5
    %v1448 = vadd.f32 %v1447, 0.5
    %v1449 = vmul.f32 %v1442, 0.5
    %v1450 = vtanh.pop %v1449
    %v1451 = vmul.f32 %v1450, 0.5
    %v1452 = vadd.f32 %v1451, 0.5
    %v1453 = vtanh.pop %v1443
    %v1454 = vmul.f32 %v1444, 0.5
    %v1455 = vtanh.pop %v1454
    %v1456 = vmul.f32 %v1455, 0.5
    %v1457 = vadd.f32 %v1456, 0.5
    %v1458 = vmul.f32 %v1452, %v1291
    %v1459 = vmul.f32 %v1448, %v1453
    %v1460 = vadd.f32 %v1458, %v1459
    %v1461 = vtanh.pop %v1460
    %v1462 = vmul.f32 %v1457, %v1461
    %1463 = vst [vmem:[#allocation2] sm:$0xff] %v1462
    %1464 = vst [vmem:[#allocation3] sm:$0xff] %v1460
    // Predicated region
    $region22: #{tpu_custom_call.1} parent=1 // pred_check
      %p1465 = pneg %p40
    $region23: #{tpu_custom_call.1} parent=1 // pred_check_branch
      %1467 = sbr.rel (%p1465) target = $region25
    $region24: #{tpu_custom_call.1} parent=1 // pred_region
      %v1468 = vld [vmem:[#allocation2] sm:$0xff]
      %1469 = vst [vmem:[#allocation9] sm:$0xff] %v1468
    $region25: #{tpu_custom_call.1} parent=1 // pred_fallthru
      _
    // Predicated region
    $region26: #{tpu_custom_call.1} parent=1 // pred_check
      _
    $region27: #{tpu_custom_call.1} parent=1 // pred_check_branch
      %1471 = sbr.rel (0) target = $region29
    $region28: #{tpu_custom_call.1} parent=1 // pred_region
      %s1473 = ssub.s32 128, 128
      %1474 = vsyncadd [#allocation6], %s1473
      %s1476 = sshll.u32 [#allocation9], 4
      %s1477 = int_to_ptr.vmem [resolvable:$true] %s1476
      %1479 = dma.vmem_to_hbm [thread:$0]  %s1477, 128, %s2, [#allocation6]
    $region29: #{tpu_custom_call.1} parent=1 // pred_fallthru
      _
    // Predicated region
    $region30: #{tpu_custom_call.1} parent=1 // pred_check
      _
    $region31: #{tpu_custom_call.1} parent=1 // pred_check_branch
      %1481 = sbr.rel (0) target = $region33
    $region32: #{tpu_custom_call.1} parent=1 // pred_region
      %1482 = dma.done [#allocation6], 128
    $region33: #{tpu_custom_call.1} parent=1 // pred_fallthru
      _
    %1483 = vsyncpa [#allocation5], 1
    %1484 = vsyncpa [#allocation8], 1
    %1485 = vsyncpa [#allocation6], 1

</llo_original>
